<compile_context>
chip_gen: v7x
topology: tpu7x:2x2x1
jax: 0.10.0
libtpu: 0.0.40
codegen_flags: <defaults>
</compile_context>

<pallas_src>
import functools

import jax
import jax.numpy as jnp
from jax import lax
from jax.experimental import pallas as pl
from jax.experimental.pallas import tpu as pltpu


# Explicit scoped-VMEM limit with headroom (safe on v5e/v6e/v7x).
_VMEM_LIMIT = 32 * 1024 * 1024
# Double-buffered per-step block budget under which we keep the full
# contraction dim resident and drop the K grid axis.
_FULL_K_BYTES = 16 * 1024 * 1024


def _pick_tile(dim, target, align):
    """Largest tile <= target that divides dim and respects alignment.

    If dim <= target the full dim is used (block == array dim, always legal).
    """
    if dim <= target:
        return dim
    t = (target // align) * align
    while t >= align:
        if dim % t == 0:
            return t
        t -= align
    return dim


# ------------------------- tiled matmul + bias (+GELU) ----------------------

def _matmul_bias_kernel(x_ref, w_ref, b_ref, o_ref, *, activation):
    # Full-K block: single MXU pass, no accumulator scratch, no K-phase gating.
    y = jnp.dot(x_ref[...], w_ref[...], preferred_element_type=jnp.float32)
    y = y + b_ref[...]
    if activation == "gelu":
        # TODO(synk): HF BERT uses exact erf-GELU; tanh approximation here.
        y = jax.nn.gelu(y, approximate=True)
    o_ref[...] = y.astype(o_ref.dtype)


def _matmul_bias_ktiled_kernel(x_ref, w_ref, b_ref, o_ref, acc_ref, *,
                               activation):
    @pl.when(pl.program_id(2) == 0)
    def _():
        acc_ref[...] = jnp.zeros_like(acc_ref)

    acc_ref[...] += jnp.dot(x_ref[...], w_ref[...],
                            preferred_element_type=jnp.float32)

    @pl.when(pl.program_id(2) == pl.num_programs(2) - 1)
    def _():
        y = acc_ref[...] + b_ref[...]
        if activation == "gelu":
            y = jax.nn.gelu(y, approximate=True)
        o_ref[...] = y.astype(o_ref.dtype)


def matmul_bias(x, w, b, activation=None, out_dtype=jnp.bfloat16):
    """x: [M, K] bf16, w: [K, N] bf16, b: [N] f32 -> [M, N] (optionally GELU)."""
    M, K = x.shape
    _, N = w.shape
    tm = _pick_tile(M, 512, 8)
    tn = _pick_tile(N, 512, 128)
    b2 = b.reshape(1, N).astype(jnp.float32)
    itemsize = 2  # bf16 activations / weights
    cost = pl.CostEstimate(
        flops=2 * M * K * N,
        transcendentals=(M * N) if activation == "gelu" else 0,
        bytes_accessed=itemsize * ((N // tn) * M * K + (M // tm) * K * N
                                   + M * N) + 4 * N)

    full_k_bytes = 2 * itemsize * (tm * K + K * tn + tm * tn)
    if full_k_bytes <= _FULL_K_BYTES:
        # Full-K blocks: 2-D grid, no reduction axis, no accumulator scratch.
        return pl.pallas_call(
            functools.partial(_matmul_bias_kernel, activation=activation),
            out_shape=jax.ShapeDtypeStruct((M, N), out_dtype),
            grid=(M // tm, N // tn),
            in_specs=[
                pl.BlockSpec((tm, K), lambda i, j: (i, 0)),
                pl.BlockSpec((K, tn), lambda i, j: (0, j)),
                pl.BlockSpec((1, tn), lambda i, j: (0, j)),
            ],
            out_specs=pl.BlockSpec((tm, tn), lambda i, j: (i, j)),
            compiler_params=pltpu.CompilerParams(
                dimension_semantics=("parallel", "parallel"),
                vmem_limit_bytes=_VMEM_LIMIT),
            cost_estimate=cost,
        )(x, w, b2)

    # Fallback for very large K: K-tiled reduction with f32 VMEM accumulator.
    tk = _pick_tile(K, 512, 128)
    return pl.pallas_call(
        functools.partial(_matmul_bias_ktiled_kernel, activation=activation),
        out_shape=jax.ShapeDtypeStruct((M, N), out_dtype),
        grid=(M // tm, N // tn, K // tk),
        in_specs=[
            pl.BlockSpec((tm, tk), lambda i, j, k: (i, k)),
            pl.BlockSpec((tk, tn), lambda i, j, k: (k, j)),
            pl.BlockSpec((1, tn), lambda i, j, k: (0, j)),
        ],
        out_specs=pl.BlockSpec((tm, tn), lambda i, j, k: (i, j)),
        scratch_shapes=[pltpu.VMEM((tm, tn), jnp.float32)],
        compiler_params=pltpu.CompilerParams(
            dimension_semantics=("parallel", "parallel", "arbitrary"),
            vmem_limit_bytes=_VMEM_LIMIT),
        cost_estimate=cost,
    )(x, w, b2)


# --------------- matmul + bias + residual-add + LayerNorm (resident w) ------

def _matmul_bias_add_ln_kernel(x_ref, w_ref, b_ref, r_ref, g_ref, bt_ref,
                               o_ref, *, eps):
    # Weight fully resident in VMEM: single MXU pass per row-block, then the
    # bias + residual + LayerNorm epilogue fused in-register (f32 stats).
    y = jnp.dot(x_ref[...], w_ref[...], preferred_element_type=jnp.float32)
    y = y + b_ref[...] + r_ref[...].astype(jnp.float32)
    mean = jnp.mean(y, axis=-1, keepdims=True)
    var = jnp.mean((y - mean) ** 2, axis=-1, keepdims=True)
    yn = (y - mean) * lax.rsqrt(var + eps)
    o_ref[...] = (yn * g_ref[...] + bt_ref[...]).astype(o_ref.dtype)


def matmul_bias_add_ln(x, w, b, residual, gamma, beta, eps=1e-12,
                       out_dtype=jnp.bfloat16):
    """LayerNorm(x @ w + b + residual).  x: [M, K], w: [K, N], residual: [M, N]."""
    M, K = x.shape
    _, N = w.shape
    tm = _pick_tile(M, 256, 8)
    b2 = b.reshape(1, N).astype(jnp.float32)
    g2 = gamma.reshape(1, N).astype(jnp.float32)
    bt2 = beta.reshape(1, N).astype(jnp.float32)
    cost = pl.CostEstimate(
        flops=2 * M * K * N + 8 * M * N,
        transcendentals=M,
        bytes_accessed=2 * (M * K + K * N + 2 * M * N) + 3 * 4 * N)
    return pl.pallas_call(
        functools.partial(_matmul_bias_add_ln_kernel, eps=eps),
        out_shape=jax.ShapeDtypeStruct((M, N), out_dtype),
        grid=(M // tm,),
        in_specs=[
            pl.BlockSpec((tm, K), lambda i: (i, 0)),
            pl.BlockSpec((K, N), lambda i: (0, 0)),   # weight read from HBM once
            pl.BlockSpec((1, N), lambda i: (0, 0)),
            pl.BlockSpec((tm, N), lambda i: (i, 0)),
            pl.BlockSpec((1, N), lambda i: (0, 0)),
            pl.BlockSpec((1, N), lambda i: (0, 0)),
        ],
        out_specs=pl.BlockSpec((tm, N), lambda i: (i, 0)),
        compiler_params=pltpu.CompilerParams(
            dimension_semantics=("parallel",),
            vmem_limit_bytes=_VMEM_LIMIT),
        cost_estimate=cost,
    )(x, w, b2, residual, g2, bt2)


# --------------------------- row-tiled LayerNorm -----------------------------

def _layernorm_kernel(x_ref, g_ref, b_ref, o_ref, *, eps):
    x = x_ref[...].astype(jnp.float32)
    mean = jnp.mean(x, axis=-1, keepdims=True)
    var = jnp.mean((x - mean) ** 2, axis=-1, keepdims=True)
    y = (x - mean) * lax.rsqrt(var + eps)
    o_ref[...] = (y * g_ref[...] + b_ref[...]).astype(o_ref.dtype)


def layernorm(x, gamma, beta, eps=1e-12, out_dtype=jnp.bfloat16):
    """LayerNorm over the last dim, tiled over rows.  x: [M, H]."""
    M, H = x.shape
    tm = _pick_tile(M, 1024, 8)
    g2 = gamma.reshape(1, H).astype(jnp.float32)
    b2 = beta.reshape(1, H).astype(jnp.float32)
    return pl.pallas_call(
        functools.partial(_layernorm_kernel, eps=eps),
        out_shape=jax.ShapeDtypeStruct((M, H), out_dtype),
        grid=(M // tm,),
        in_specs=[
            pl.BlockSpec((tm, H), lambda i: (i, 0)),
            pl.BlockSpec((1, H), lambda i: (0, 0)),
            pl.BlockSpec((1, H), lambda i: (0, 0)),
        ],
        out_specs=pl.BlockSpec((tm, H), lambda i: (i, 0)),
        compiler_params=pltpu.CompilerParams(
            dimension_semantics=("parallel",),
            vmem_limit_bytes=_VMEM_LIMIT),
    )(x, g2, b2)


# ------------------------- multi-head self-attention -------------------------

def _attention_kernel(qkv_ref, bias_ref, o_ref, *, num_heads, head_dim, q_tile):
    # qkv_ref: [1, S, 3H] bf16 fused Q|K|V slab (constant over the query axis,
    #          so Pallas does not re-DMA it between query tiles).
    # bias_ref: [1, 1, S] f32 additive mask over key positions.
    # o_ref:   [1, tq, H] bf16 merged-head context for this query tile.
    H = num_heads * head_dim
    row0 = pl.multiple_of(pl.program_id(1) * q_tile, q_tile)
    qkv_q = qkv_ref[0, pl.ds(row0, q_tile), :]        # [tq, 3H] query rows
    kv = qkv_ref[0]                                   # [S, 3H]  all key rows
    bias = bias_ref[0]                                # [1, S]
    ctxs = []
    # TODO(synk): Dh=64 head slices fill only part of a 256-wide MXU; a
    # head-pair (128-lane) layout would further cut XLU relayouts on v6e/v7x.
    for h in range(num_heads):
        # 1/sqrt(Dh) is folded into wqkv/bqkv at init -> no in-kernel scale.
        q = qkv_q[:, h * head_dim:(h + 1) * head_dim]
        k = kv[:, H + h * head_dim:H + (h + 1) * head_dim]
        v = kv[:, 2 * H + h * head_dim:2 * H + (h + 1) * head_dim]
        # Contract last dims directly (no explicit k.T / relayout).
        s = lax.dot_general(q, k, (((1,), (1,)), ((), ())),
                            preferred_element_type=jnp.float32)     # [tq, S]
        s = s + bias                                                  # bcast rows
        s = s - jnp.max(s, axis=-1, keepdims=True)
        # bf16 exponent: halves EUP time on v6e/v7x (values are <= 0 after the
        # max shift); lowered via f32 on v5e, so correct everywhere.
        p = jnp.exp(s.astype(jnp.bfloat16))                           # [tq, S]
        denom = jnp.sum(p.astype(jnp.float32), axis=-1, keepdims=True)
        ctx = jnp.dot(p, v, preferred_element_type=jnp.float32)      # [tq, Dh]
        # Normalize after P.V (linearity): scale touches [tq,Dh], not [tq,S].
        ctxs.append(ctx * pl.reciprocal(denom, approx=True))         # EUP divide
    # Single lane-dense store of the merged-head context (layout already what
    # the output projection expects -> no transposes in HBM).
    o_ref[0] = jnp.concatenate(ctxs, axis=-1).astype(o_ref.dtype)


def attention(qkv, mask_bias, num_heads):
    """qkv: [B, S, 3H] bf16; mask_bias: [B, 1, S] f32 additive -> [B, S, H] bf16."""
    B, S, H3 = qkv.shape
    H = H3 // 3
    Dh = H // num_heads
    tq = _pick_tile(S, 256, 8)
    return pl.pallas_call(
        functools.partial(_attention_kernel, num_heads=num_heads,
                          head_dim=Dh, q_tile=tq),
        out_shape=jax.ShapeDtypeStruct((B, S, H), jnp.bfloat16),
        grid=(B, S // tq),
        in_specs=[
            pl.BlockSpec((1, S, H3), lambda b, qi: (b, 0, 0)),
            pl.BlockSpec((1, 1, S), lambda b, qi: (b, 0, 0)),
        ],
        out_specs=pl.BlockSpec((1, tq, H), lambda b, qi: (b, qi, 0)),
        compiler_params=pltpu.CompilerParams(
            dimension_semantics=("parallel", "parallel"),
            vmem_limit_bytes=_VMEM_LIMIT),
    )(qkv, mask_bias)


# --------------------------- BERT encoder (glue) ----------------------------

def init_bert_params(key, vocab_size, max_pos, hidden, intermediate,
                     num_layers, num_heads):
    def dense(k, shape, scale=0.02):
        return (scale * jax.random.normal(k, shape, dtype=jnp.float32)
                ).astype(jnp.bfloat16)

    head_dim = hidden // num_heads
    q_scale = 1.0 / float(head_dim) ** 0.5
    # Fold 1/sqrt(Dh) into the Q columns of the fused QKV projection (exact,
    # one-time transform of static weights; removes the in-kernel scale mul).
    qkv_col_scale = jnp.concatenate(
        [jnp.full((hidden,), q_scale, jnp.float32),
         jnp.ones((2 * hidden,), jnp.float32)])

    keys = jax.random.split(key, 4 + num_layers)
    params = {
        "word_emb": 0.02 * jax.random.normal(keys[0], (vocab_size, hidden), jnp.float32),
        "pos_emb": 0.02 * jax.random.normal(keys[1], (max_pos, hidden), jnp.float32),
        "type_emb": 0.02 * jax.random.normal(keys[2], (2, hidden), jnp.float32),
        "emb_ln_g": jnp.ones((hidden,), jnp.float32),
        "emb_ln_b": jnp.zeros((hidden,), jnp.float32),
        "layers": [],
    }
    for li in range(num_layers):
        lk = jax.random.split(keys[4 + li], 4)
        wqkv = (dense(lk[0], (hidden, 3 * hidden)).astype(jnp.float32)
                * qkv_col_scale[None, :]).astype(jnp.bfloat16)
        bqkv = jnp.zeros((3 * hidden,), jnp.float32) * qkv_col_scale
        params["layers"].append({
            "wqkv": wqkv,               # fused [H, 3H], Q columns pre-scaled
            "bqkv": bqkv,
            "wo": dense(lk[1], (hidden, hidden)),
            "bo": jnp.zeros((hidden,), jnp.float32),
            "ln1_g": jnp.ones((hidden,), jnp.float32),
            "ln1_b": jnp.zeros((hidden,), jnp.float32),
            "w1": dense(lk[2], (hidden, intermediate)),
            "b1": jnp.zeros((intermediate,), jnp.float32),
            "w2": dense(lk[3], (intermediate, hidden)),
            "b2": jnp.zeros((hidden,), jnp.float32),
            "ln2_g": jnp.ones((hidden,), jnp.float32),
            "ln2_b": jnp.zeros((hidden,), jnp.float32),
        })
    return params


def encoder_layer(x, mask_bias, lp, num_heads):
    B, S, H = x.shape
    x2 = x.reshape(B * S, H)                                        # bf16

    # Fused QKV projection: one GEMM, x read from HBM once.
    qkv = matmul_bias(x2, lp["wqkv"], lp["bqkv"])                   # [B*S, 3H]
    ctx = attention(qkv.reshape(B, S, 3 * H), mask_bias, num_heads)  # [B, S, H]

    # Attention output projection fused with residual-add + LayerNorm.
    h = matmul_bias_add_ln(ctx.reshape(B * S, H), lp["wo"], lp["bo"],
                           x2, lp["ln1_g"], lp["ln1_b"])

    # FFN: up-projection + GELU, then down-projection fused with add + LN.
    ffn = matmul_bias(h, lp["w1"], lp["b1"], activation="gelu")
    out = matmul_bias_add_ln(ffn, lp["w2"], lp["b2"],
                             h, lp["ln2_g"], lp["ln2_b"])
    return out.reshape(B, S, H)


def bioclinicalbert_ft_forward(params, input_ids, attention_mask, num_heads):
    """Equivalent of BioClinicalBERT_FT.forward: returns CLS embedding [B, H]."""
    B, S = input_ids.shape
    H = params["word_emb"].shape[1]

    # Embedding gather + add is XLA glue; LayerNorm is a Pallas kernel.
    # TODO(synk): token_type_ids are assumed all-zero (single-segment inputs).
    emb = (params["word_emb"][input_ids]
           + params["pos_emb"][:S][None, :, :]
           + params["type_emb"][0][None, None, :]).astype(jnp.bfloat16)
    x = layernorm(emb.reshape(B * S, H),
                  params["emb_ln_g"], params["emb_ln_b"]).reshape(B, S, H)

    # Additive attention-mask bias kept at [B, 1, S]; broadcast happens inside
    # the attention kernel (no [B*nH, S, S] materialization in HBM).
    mask_bias = ((1.0 - attention_mask.astype(jnp.float32)) * -1e4)[:, None, :]

    for lp in params["layers"]:
        x = encoder_layer(x, mask_bias, lp, num_heads)

    cls_embedding = x[:, 0, :].astype(jnp.float32)   # last_hidden_state[:, 0, :]
    return cls_embedding


# ---------------------------------- main -------------------------------------

if __name__ == "__main__":
    B, S, H, NH, I = 2, 8, 32, 4, 64
    VOCAB, MAX_POS, LAYERS = 64, 16, 2

    key = jax.random.PRNGKey(0)
    kp, kid = jax.random.split(key)
    params = init_bert_params(kp, VOCAB, MAX_POS, H, I, LAYERS, NH)

    input_ids = jax.random.randint(kid, (B, S), 0, VOCAB, dtype=jnp.int32)
    attention_mask = jnp.array(
        [[1, 1, 1, 1, 1, 1, 1, 1],
         [1, 1, 1, 1, 1, 0, 0, 0]], dtype=jnp.int32)

    fwd = jax.jit(functools.partial(bioclinicalbert_ft_forward, num_heads=NH))
    cls = fwd(params, input_ids, attention_mask)
    cls = jax.block_until_ready(cls)

    assert cls.shape == (B, H) and cls.dtype == jnp.float32
    assert bool(jnp.all(jnp.isfinite(cls)))
    print("KERNEL_OK")
</pallas_src>

<mosaic_0001>
module attributes {stable_mosaic.version = 11 : i64} {
  func.func @_layernorm_kernel(%arg0: i32, %arg1: memref<16x32xbf16, #tpu.memory_space<vmem>>, %arg2: memref<1x32xf32, #tpu.memory_space<vmem>>, %arg3: memref<1x32xf32, #tpu.memory_space<vmem>>, %arg4: memref<16x32xbf16, #tpu.memory_space<vmem>>) attributes {dimension_semantics = [#tpu.dimension_semantics<parallel>], iteration_bounds = array<i64: 1>, scalar_prefetch = 0 : i64, scratch_operands = 0 : i64, tpu.core_type = #tpu.core_type<tc>, window_params = [{transform_indices = @transform_0, window_bounds = array<i64: 16, 32>}, {pipeline_mode = #tpu.pipeline_mode<synchronous>, transform_indices = @transform_1, window_bounds = array<i64: 1, 32>}, {pipeline_mode = #tpu.pipeline_mode<synchronous>, transform_indices = @transform_2, window_bounds = array<i64: 1, 32>}, {transform_indices = @transform_3, window_bounds = array<i64: 16, 32>}]} {
    %c0 = arith.constant 0 : index
    %c0_0 = arith.constant 0 : index
    %0 = vector.load %arg1[%c0, %c0_0] : memref<16x32xbf16, #tpu.memory_space<vmem>>, vector<16x32xbf16>
    %1 = arith.extf %0 : vector<16x32xbf16> to vector<16x32xf32>
    %cst = arith.constant dense<0.000000e+00> : vector<16xf32>
    %2 = vector.multi_reduction <add>, %1, %cst [1] : vector<16x32xf32> to vector<16xf32>
    %3 = vector.shape_cast %2 : vector<16xf32> to vector<16x1xf32>
    %cst_1 = arith.constant 3.200000e+01 : f32
    %4 = vector.broadcast %cst_1 : f32 to vector<16x1xf32>
    %5 = arith.divf %3, %4 : vector<16x1xf32>
    %6 = vector.broadcast %5 : vector<16x1xf32> to vector<16x32xf32>
    %7 = arith.subf %1, %6 : vector<16x32xf32>
    %8 = arith.mulf %7, %7 : vector<16x32xf32>
    %cst_2 = arith.constant dense<0.000000e+00> : vector<16xf32>
    %9 = vector.multi_reduction <add>, %8, %cst_2 [1] : vector<16x32xf32> to vector<16xf32>
    %10 = vector.shape_cast %9 : vector<16xf32> to vector<16x1xf32>
    %cst_3 = arith.constant 3.200000e+01 : f32
    %11 = vector.broadcast %cst_3 : f32 to vector<16x1xf32>
    %12 = arith.divf %10, %11 : vector<16x1xf32>
    %13 = vector.broadcast %5 : vector<16x1xf32> to vector<16x32xf32>
    %14 = arith.subf %1, %13 : vector<16x32xf32>
    %cst_4 = arith.constant 9.99999996E-13 : f32
    %15 = vector.broadcast %cst_4 : f32 to vector<16x1xf32>
    %16 = arith.addf %12, %15 : vector<16x1xf32>
    %17 = math.rsqrt %16 : vector<16x1xf32>
    %18 = vector.broadcast %17 : vector<16x1xf32> to vector<16x32xf32>
    %19 = arith.mulf %14, %18 : vector<16x32xf32>
    %c0_5 = arith.constant 0 : index
    %c0_6 = arith.constant 0 : index
    %20 = vector.load %arg2[%c0_5, %c0_6] : memref<1x32xf32, #tpu.memory_space<vmem>>, vector<1x32xf32>
    %21 = vector.broadcast %20 : vector<1x32xf32> to vector<16x32xf32>
    %22 = arith.mulf %19, %21 : vector<16x32xf32>
    %c0_7 = arith.constant 0 : index
    %c0_8 = arith.constant 0 : index
    %23 = vector.load %arg3[%c0_7, %c0_8] : memref<1x32xf32, #tpu.memory_space<vmem>>, vector<1x32xf32>
    %24 = vector.broadcast %23 : vector<1x32xf32> to vector<16x32xf32>
    %25 = arith.addf %22, %24 : vector<16x32xf32>
    %26 = arith.truncf %25 : vector<16x32xf32> to vector<16x32xbf16>
    %c0_9 = arith.constant 0 : index
    %c0_10 = arith.constant 0 : index
    %27 = vector.load %arg4[%c0_9, %c0_10] : memref<16x32xbf16, #tpu.memory_space<vmem>>, vector<16x32xbf16>
    tpu.vector_store %arg4[%c0_9, %c0_10], %26 {strides = array<i32>} : memref<16x32xbf16, #tpu.memory_space<vmem>>, vector<16x32xbf16>,
    return
  }
  func.func @transform_0(%arg0: i32) -> (i32, i32) {
    %c0_i32 = arith.constant 0 : i32
    %c0_i32_0 = arith.constant 0 : i32
    return %arg0, %c0_i32 : i32, i32
  }
  func.func @transform_1(%arg0: i32) -> (i32, i32) {
    %c0_i32 = arith.constant 0 : i32
    %c0_i32_0 = arith.constant 0 : i32
    %c0_i32_1 = arith.constant 0 : i32
    return %c0_i32, %c0_i32_0 : i32, i32
  }
  func.func @transform_2(%arg0: i32) -> (i32, i32) {
    %c0_i32 = arith.constant 0 : i32
    %c0_i32_0 = arith.constant 0 : i32
    %c0_i32_1 = arith.constant 0 : i32
    return %c0_i32, %c0_i32_0 : i32, i32
  }
  func.func @transform_3(%arg0: i32) -> (i32, i32) {
    %c0_i32 = arith.constant 0 : i32
    %c0_i32_0 = arith.constant 0 : i32
    return %arg0, %c0_i32 : i32, i32
  }
}

module attributes {stable_mosaic.version = 11 : i64} {
  func.func @_matmul_bias_kernel(%arg0: i32, %arg1: i32, %arg2: memref<16x32xbf16, #tpu.memory_space<vmem>>, %arg3: memref<32x96xbf16, #tpu.memory_space<vmem>>, %arg4: memref<1x96xf32, #tpu.memory_space<vmem>>, %arg5: memref<16x96xbf16, #tpu.memory_space<vmem>>) attributes {dimension_semantics = [#tpu.dimension_semantics<parallel>, #tpu.dimension_semantics<parallel>], iteration_bounds = array<i64: 1, 1>, scalar_prefetch = 0 : i64, scratch_operands = 0 : i64, tpu.core_type = #tpu.core_type<tc>, window_params = [{transform_indices = @transform_0, window_bounds = array<i64: 16, 32>}, {transform_indices = @transform_1, window_bounds = array<i64: 32, 96>}, {transform_indices = @transform_2, window_bounds = array<i64: 1, 96>}, {transform_indices = @transform_3, window_bounds = array<i64: 16, 96>}]} {
    %c0 = arith.constant 0 : index
    %c0_0 = arith.constant 0 : index
    %0 = vector.load %arg2[%c0, %c0_0] : memref<16x32xbf16, #tpu.memory_space<vmem>>, vector<16x32xbf16>
    %c0_1 = arith.constant 0 : index
    %c0_2 = arith.constant 0 : index
    %1 = vector.load %arg3[%c0_1, %c0_2] : memref<32x96xbf16, #tpu.memory_space<vmem>>, vector<32x96xbf16>
    %cst = arith.constant dense<0.000000e+00> : vector<16x96xf32>
    %2 = tpu.matmul %0, %1, %cst {dimension_numbers = #tpu.dot_dimension_numbers<[1], [0], [0], [1], [0, 0, 1, 1], [], []>} : vector<16x32xbf16>, vector<32x96xbf16>, vector<16x96xf32> -> vector<16x96xf32>
    %c0_3 = arith.constant 0 : index
    %c0_4 = arith.constant 0 : index
    %3 = vector.load %arg4[%c0_3, %c0_4] : memref<1x96xf32, #tpu.memory_space<vmem>>, vector<1x96xf32>
    %4 = vector.broadcast %3 : vector<1x96xf32> to vector<16x96xf32>
    %5 = arith.addf %2, %4 : vector<16x96xf32>
    %6 = arith.truncf %5 : vector<16x96xf32> to vector<16x96xbf16>
    %c0_5 = arith.constant 0 : index
    %c0_6 = arith.constant 0 : index
    %7 = vector.load %arg5[%c0_5, %c0_6] : memref<16x96xbf16, #tpu.memory_space<vmem>>, vector<16x96xbf16>
    tpu.vector_store %arg5[%c0_5, %c0_6], %6 {strides = array<i32>} : memref<16x96xbf16, #tpu.memory_space<vmem>>, vector<16x96xbf16>,
    return
  }
  func.func @transform_0(%arg0: i32, %arg1: i32) -> (i32, i32) {
    %c0_i32 = arith.constant 0 : i32
    %c0_i32_0 = arith.constant 0 : i32
    return %arg0, %c0_i32 : i32, i32
  }
  func.func @transform_1(%arg0: i32, %arg1: i32) -> (i32, i32) {
    %c0_i32 = arith.constant 0 : i32
    %c0_i32_0 = arith.constant 0 : i32
    return %c0_i32, %arg1 : i32, i32
  }
  func.func @transform_2(%arg0: i32, %arg1: i32) -> (i32, i32) {
    %c0_i32 = arith.constant 0 : i32
    %c0_i32_0 = arith.constant 0 : i32
    return %c0_i32, %arg1 : i32, i32
  }
  func.func @transform_3(%arg0: i32, %arg1: i32) -> (i32, i32) {
    %c0_i32 = arith.constant 0 : i32
    return %arg0, %arg1 : i32, i32
  }
}

module attributes {stable_mosaic.version = 11 : i64} {
  func.func @_matmul_bias_add_ln_kernel(%arg0: i32, %arg1: memref<16x32xbf16, #tpu.memory_space<vmem>>, %arg2: memref<32x32xbf16, #tpu.memory_space<vmem>>, %arg3: memref<1x32xf32, #tpu.memory_space<vmem>>, %arg4: memref<16x32xbf16, #tpu.memory_space<vmem>>, %arg5: memref<1x32xf32, #tpu.memory_space<vmem>>, %arg6: memref<1x32xf32, #tpu.memory_space<vmem>>, %arg7: memref<16x32xbf16, #tpu.memory_space<vmem>>) attributes {dimension_semantics = [#tpu.dimension_semantics<parallel>], iteration_bounds = array<i64: 1>, scalar_prefetch = 0 : i64, scratch_operands = 0 : i64, tpu.core_type = #tpu.core_type<tc>, window_params = [{transform_indices = @transform_0, window_bounds = array<i64: 16, 32>}, {pipeline_mode = #tpu.pipeline_mode<synchronous>, transform_indices = @transform_1, window_bounds = array<i64: 32, 32>}, {pipeline_mode = #tpu.pipeline_mode<synchronous>, transform_indices = @transform_2, window_bounds = array<i64: 1, 32>}, {transform_indices = @transform_3, window_bounds = array<i64: 16, 32>}, {pipeline_mode = #tpu.pipeline_mode<synchronous>, transform_indices = @transform_4, window_bounds = array<i64: 1, 32>}, {pipeline_mode = #tpu.pipeline_mode<synchronous>, transform_indices = @transform_5, window_bounds = array<i64: 1, 32>}, {transform_indices = @transform_6, window_bounds = array<i64: 16, 32>}]} {
    %c0 = arith.constant 0 : index
    %c0_0 = arith.constant 0 : index
    %0 = vector.load %arg1[%c0, %c0_0] : memref<16x32xbf16, #tpu.memory_space<vmem>>, vector<16x32xbf16>
    %c0_1 = arith.constant 0 : index
    %c0_2 = arith.constant 0 : index
    %1 = vector.load %arg2[%c0_1, %c0_2] : memref<32x32xbf16, #tpu.memory_space<vmem>>, vector<32x32xbf16>
    %cst = arith.constant dense<0.000000e+00> : vector<16x32xf32>
    %2 = tpu.matmul %0, %1, %cst {dimension_numbers = #tpu.dot_dimension_numbers<[1], [0], [0], [1], [0, 0, 1, 1], [], []>} : vector<16x32xbf16>, vector<32x32xbf16>, vector<16x32xf32> -> vector<16x32xf32>
    %c0_3 = arith.constant 0 : index
    %c0_4 = arith.constant 0 : index
    %3 = vector.load %arg3[%c0_3, %c0_4] : memref<1x32xf32, #tpu.memory_space<vmem>>, vector<1x32xf32>
    %4 = vector.broadcast %3 : vector<1x32xf32> to vector<16x32xf32>
    %5 = arith.addf %2, %4 : vector<16x32xf32>
    %c0_5 = arith.constant 0 : index
    %c0_6 = arith.constant 0 : index
    %6 = vector.load %arg4[%c0_5, %c0_6] : memref<16x32xbf16, #tpu.memory_space<vmem>>, vector<16x32xbf16>
    %7 = arith.extf %6 : vector<16x32xbf16> to vector<16x32xf32>
    %8 = arith.addf %5, %7 : vector<16x32xf32>
    %cst_7 = arith.constant dense<0.000000e+00> : vector<16xf32>
    %9 = vector.multi_reduction <add>, %8, %cst_7 [1] : vector<16x32xf32> to vector<16xf32>
    %10 = vector.shape_cast %9 : vector<16xf32> to vector<16x1xf32>
    %cst_8 = arith.constant 3.200000e+01 : f32
    %11 = vector.broadcast %cst_8 : f32 to vector<16x1xf32>
    %12 = arith.divf %10, %11 : vector<16x1xf32>
    %13 = vector.broadcast %12 : vector<16x1xf32> to vector<16x32xf32>
    %14 = arith.subf %8, %13 : vector<16x32xf32>
    %15 = arith.mulf %14, %14 : vector<16x32xf32>
    %cst_9 = arith.constant dense<0.000000e+00> : vector<16xf32>
    %16 = vector.multi_reduction <add>, %15, %cst_9 [1] : vector<16x32xf32> to vector<16xf32>
    %17 = vector.shape_cast %16 : vector<16xf32> to vector<16x1xf32>
    %cst_10 = arith.constant 3.200000e+01 : f32
    %18 = vector.broadcast %cst_10 : f32 to vector<16x1xf32>
    %19 = arith.divf %17, %18 : vector<16x1xf32>
    %20 = vector.broadcast %12 : vector<16x1xf32> to vector<16x32xf32>
    %21 = arith.subf %8, %20 : vector<16x32xf32>
    %cst_11 = arith.constant 9.99999996E-13 : f32
    %22 = vector.broadcast %cst_11 : f32 to vector<16x1xf32>
    %23 = arith.addf %19, %22 : vector<16x1xf32>
    %24 = math.rsqrt %23 : vector<16x1xf32>
    %25 = vector.broadcast %24 : vector<16x1xf32> to vector<16x32xf32>
    %26 = arith.mulf %21, %25 : vector<16x32xf32>
    %c0_12 = arith.constant 0 : index
    %c0_13 = arith.constant 0 : index
    %27 = vector.load %arg5[%c0_12, %c0_13] : memref<1x32xf32, #tpu.memory_space<vmem>>, vector<1x32xf32>
    %28 = vector.broadcast %27 : vector<1x32xf32> to vector<16x32xf32>
    %29 = arith.mulf %26, %28 : vector<16x32xf32>
    %c0_14 = arith.constant 0 : index
    %c0_15 = arith.constant 0 : index
    %30 = vector.load %arg6[%c0_14, %c0_15] : memref<1x32xf32, #tpu.memory_space<vmem>>, vector<1x32xf32>
    %31 = vector.broadcast %30 : vector<1x32xf32> to vector<16x32xf32>
    %32 = arith.addf %29, %31 : vector<16x32xf32>
    %33 = arith.truncf %32 : vector<16x32xf32> to vector<16x32xbf16>
    %c0_16 = arith.constant 0 : index
    %c0_17 = arith.constant 0 : index
    %34 = vector.load %arg7[%c0_16, %c0_17] : memref<16x32xbf16, #tpu.memory_space<vmem>>, vector<16x32xbf16>
    tpu.vector_store %arg7[%c0_16, %c0_17], %33 {strides = array<i32>} : memref<16x32xbf16, #tpu.memory_space<vmem>>, vector<16x32xbf16>,
    return
  }
  func.func @transform_0(%arg0: i32) -> (i32, i32) {
    %c0_i32 = arith.constant 0 : i32
    %c0_i32_0 = arith.constant 0 : i32
    return %arg0, %c0_i32 : i32, i32
  }
  func.func @transform_1(%arg0: i32) -> (i32, i32) {
    %c0_i32 = arith.constant 0 : i32
    %c0_i32_0 = arith.constant 0 : i32
    %c0_i32_1 = arith.constant 0 : i32
    return %c0_i32, %c0_i32_0 : i32, i32
  }
  func.func @transform_2(%arg0: i32) -> (i32, i32) {
    %c0_i32 = arith.constant 0 : i32
    %c0_i32_0 = arith.constant 0 : i32
    %c0_i32_1 = arith.constant 0 : i32
    return %c0_i32, %c0_i32_0 : i32, i32
  }
  func.func @transform_3(%arg0: i32) -> (i32, i32) {
    %c0_i32 = arith.constant 0 : i32
    %c0_i32_0 = arith.constant 0 : i32
    return %arg0, %c0_i32 : i32, i32
  }
  func.func @transform_4(%arg0: i32) -> (i32, i32) {
    %c0_i32 = arith.constant 0 : i32
    %c0_i32_0 = arith.constant 0 : i32
    %c0_i32_1 = arith.constant 0 : i32
    return %c0_i32, %c0_i32_0 : i32, i32
  }
  func.func @transform_5(%arg0: i32) -> (i32, i32) {
    %c0_i32 = arith.constant 0 : i32
    %c0_i32_0 = arith.constant 0 : i32
    %c0_i32_1 = arith.constant 0 : i32
    return %c0_i32, %c0_i32_0 : i32, i32
  }
  func.func @transform_6(%arg0: i32) -> (i32, i32) {
    %c0_i32 = arith.constant 0 : i32
    %c0_i32_0 = arith.constant 0 : i32
    return %arg0, %c0_i32 : i32, i32
  }
}

module attributes {stable_mosaic.version = 11 : i64} {
  func.func @_attention_kernel(%arg0: i32, %arg1: i32, %arg2: memref<1x8x96xbf16, #tpu.memory_space<vmem>>, %arg3: memref<1x1x8xf32, #tpu.memory_space<vmem>>, %arg4: memref<1x8x32xbf16, #tpu.memory_space<vmem>>) attributes {dimension_semantics = [#tpu.dimension_semantics<parallel>, #tpu.dimension_semantics<parallel>], iteration_bounds = array<i64: 2, 1>, scalar_prefetch = 0 : i64, scratch_operands = 0 : i64, tpu.core_type = #tpu.core_type<tc>, window_params = [{transform_indices = @transform_0, window_bounds = array<i64: 1, 8, 96>}, {transform_indices = @transform_1, window_bounds = array<i64: 1, 1, 8>}, {transform_indices = @transform_2, window_bounds = array<i64: 1, 8, 32>}]} {
    %c8_i32 = arith.constant 8 : i32
    %0 = arith.muli %arg1, %c8_i32 : i32
    %1 = tpu.assume_multiple %0, 8 : i32
    %c0 = arith.constant 0 : index
    %2 = arith.index_cast %1 : i32 to index
    %c0_0 = arith.constant 0 : index
    %3 = vector.load %arg2[%c0, %2, %c0_0] : memref<1x8x96xbf16, #tpu.memory_space<vmem>>, vector<1x8x96xbf16>
    %4 = vector.shape_cast %3 : vector<1x8x96xbf16> to vector<8x96xbf16>
    %c0_1 = arith.constant 0 : index
    %c0_2 = arith.constant 0 : index
    %c0_3 = arith.constant 0 : index
    %5 = vector.load %arg2[%c0_1, %c0_2, %c0_3] : memref<1x8x96xbf16, #tpu.memory_space<vmem>>, vector<1x8x96xbf16>
    %6 = vector.shape_cast %5 : vector<1x8x96xbf16> to vector<8x96xbf16>
    %c0_4 = arith.constant 0 : index
    %c0_5 = arith.constant 0 : index
    %c0_6 = arith.constant 0 : index
    %7 = vector.load %arg3[%c0_4, %c0_5, %c0_6] : memref<1x1x8xf32, #tpu.memory_space<vmem>>, vector<1x1x8xf32>
    %8 = vector.shape_cast %7 : vector<1x1x8xf32> to vector<1x8xf32>
    %9 = vector.extract_strided_slice %4 {offsets = [0, 0], sizes = [8, 8], strides = [1, 1]} : vector<8x96xbf16> to vector<8x8xbf16>
    %10 = vector.extract_strided_slice %6 {offsets = [0, 32], sizes = [8, 8], strides = [1, 1]} : vector<8x96xbf16> to vector<8x8xbf16>
    %11 = vector.extract_strided_slice %6 {offsets = [0, 64], sizes = [8, 8], strides = [1, 1]} : vector<8x96xbf16> to vector<8x8xbf16>
    %cst = arith.constant dense<0.000000e+00> : vector<8x8xf32>
    %12 = tpu.matmul %9, %10, %cst {dimension_numbers = #tpu.dot_dimension_numbers<[1], [1], [0], [0], [0, 0, 1, 0], [], []>} : vector<8x8xbf16>, vector<8x8xbf16>, vector<8x8xf32> -> vector<8x8xf32>
    %13 = vector.broadcast %8 : vector<1x8xf32> to vector<8x8xf32>
    %14 = arith.addf %12, %13 : vector<8x8xf32>
    %cst_7 = arith.constant dense<0xFF800000> : vector<8xf32>
    %15 = vector.multi_reduction <maximumf>, %14, %cst_7 [1] : vector<8x8xf32> to vector<8xf32>
    %16 = vector.shape_cast %15 : vector<8xf32> to vector<8x1xf32>
    %17 = vector.broadcast %16 : vector<8x1xf32> to vector<8x8xf32>
    %18 = arith.subf %14, %17 : vector<8x8xf32>
    %19 = arith.truncf %18 : vector<8x8xf32> to vector<8x8xbf16>
    %20 = math.exp %19 : vector<8x8xbf16>
    %21 = arith.extf %20 : vector<8x8xbf16> to vector<8x8xf32>
    %cst_8 = arith.constant dense<0.000000e+00> : vector<8xf32>
    %22 = vector.multi_reduction <add>, %21, %cst_8 [1] : vector<8x8xf32> to vector<8xf32>
    %23 = vector.shape_cast %22 : vector<8xf32> to vector<8x1xf32>
    %cst_9 = arith.constant dense<0.000000e+00> : vector<8x8xf32>
    %24 = tpu.matmul %20, %11, %cst_9 {dimension_numbers = #tpu.dot_dimension_numbers<[1], [0], [0], [1], [0, 0, 1, 1], [], []>} : vector<8x8xbf16>, vector<8x8xbf16>, vector<8x8xf32> -> vector<8x8xf32>
    %25 = tpu.reciprocal %23 {approx = true} : vector<8x1xf32> -> vector<8x1xf32>
    %26 = vector.broadcast %25 : vector<8x1xf32> to vector<8x8xf32>
    %27 = arith.mulf %24, %26 : vector<8x8xf32>
    %28 = vector.extract_strided_slice %4 {offsets = [0, 8], sizes = [8, 8], strides = [1, 1]} : vector<8x96xbf16> to vector<8x8xbf16>
    %29 = vector.extract_strided_slice %6 {offsets = [0, 40], sizes = [8, 8], strides = [1, 1]} : vector<8x96xbf16> to vector<8x8xbf16>
    %30 = vector.extract_strided_slice %6 {offsets = [0, 72], sizes = [8, 8], strides = [1, 1]} : vector<8x96xbf16> to vector<8x8xbf16>
    %cst_10 = arith.constant dense<0.000000e+00> : vector<8x8xf32>
    %31 = tpu.matmul %28, %29, %cst_10 {dimension_numbers = #tpu.dot_dimension_numbers<[1], [1], [0], [0], [0, 0, 1, 0], [], []>} : vector<8x8xbf16>, vector<8x8xbf16>, vector<8x8xf32> -> vector<8x8xf32>
    %32 = vector.broadcast %8 : vector<1x8xf32> to vector<8x8xf32>
    %33 = arith.addf %31, %32 : vector<8x8xf32>
    %cst_11 = arith.constant dense<0xFF800000> : vector<8xf32>
    %34 = vector.multi_reduction <maximumf>, %33, %cst_11 [1] : vector<8x8xf32> to vector<8xf32>
    %35 = vector.shape_cast %34 : vector<8xf32> to vector<8x1xf32>
    %36 = vector.broadcast %35 : vector<8x1xf32> to vector<8x8xf32>
    %37 = arith.subf %33, %36 : vector<8x8xf32>
    %38 = arith.truncf %37 : vector<8x8xf32> to vector<8x8xbf16>
    %39 = math.exp %38 : vector<8x8xbf16>
    %40 = arith.extf %39 : vector<8x8xbf16> to vector<8x8xf32>
    %cst_12 = arith.constant dense<0.000000e+00> : vector<8xf32>
    %41 = vector.multi_reduction <add>, %40, %cst_12 [1] : vector<8x8xf32> to vector<8xf32>
    %42 = vector.shape_cast %41 : vector<8xf32> to vector<8x1xf32>
    %cst_13 = arith.constant dense<0.000000e+00> : vector<8x8xf32>
    %43 = tpu.matmul %39, %30, %cst_13 {dimension_numbers = #tpu.dot_dimension_numbers<[1], [0], [0], [1], [0, 0, 1, 1], [], []>} : vector<8x8xbf16>, vector<8x8xbf16>, vector<8x8xf32> -> vector<8x8xf32>
    %44 = tpu.reciprocal %42 {approx = true} : vector<8x1xf32> -> vector<8x1xf32>
    %45 = vector.broadcast %44 : vector<8x1xf32> to vector<8x8xf32>
    %46 = arith.mulf %43, %45 : vector<8x8xf32>
    %47 = vector.extract_strided_slice %4 {offsets = [0, 16], sizes = [8, 8], strides = [1, 1]} : vector<8x96xbf16> to vector<8x8xbf16>
    %48 = vector.extract_strided_slice %6 {offsets = [0, 48], sizes = [8, 8], strides = [1, 1]} : vector<8x96xbf16> to vector<8x8xbf16>
    %49 = vector.extract_strided_slice %6 {offsets = [0, 80], sizes = [8, 8], strides = [1, 1]} : vector<8x96xbf16> to vector<8x8xbf16>
    %cst_14 = arith.constant dense<0.000000e+00> : vector<8x8xf32>
    %50 = tpu.matmul %47, %48, %cst_14 {dimension_numbers = #tpu.dot_dimension_numbers<[1], [1], [0], [0], [0, 0, 1, 0], [], []>} : vector<8x8xbf16>, vector<8x8xbf16>, vector<8x8xf32> -> vector<8x8xf32>
    %51 = vector.broadcast %8 : vector<1x8xf32> to vector<8x8xf32>
    %52 = arith.addf %50, %51 : vector<8x8xf32>
    %cst_15 = arith.constant dense<0xFF800000> : vector<8xf32>
    %53 = vector.multi_reduction <maximumf>, %52, %cst_15 [1] : vector<8x8xf32> to vector<8xf32>
    %54 = vector.shape_cast %53 : vector<8xf32> to vector<8x1xf32>
    %55 = vector.broadcast %54 : vector<8x1xf32> to vector<8x8xf32>
    %56 = arith.subf %52, %55 : vector<8x8xf32>
    %57 = arith.truncf %56 : vector<8x8xf32> to vector<8x8xbf16>
    %58 = math.exp %57 : vector<8x8xbf16>
    %59 = arith.extf %58 : vector<8x8xbf16> to vector<8x8xf32>
    %cst_16 = arith.constant dense<0.000000e+00> : vector<8xf32>
    %60 = vector.multi_reduction <add>, %59, %cst_16 [1] : vector<8x8xf32> to vector<8xf32>
    %61 = vector.shape_cast %60 : vector<8xf32> to vector<8x1xf32>
    %cst_17 = arith.constant dense<0.000000e+00> : vector<8x8xf32>
    %62 = tpu.matmul %58, %49, %cst_17 {dimension_numbers = #tpu.dot_dimension_numbers<[1], [0], [0], [1], [0, 0, 1, 1], [], []>} : vector<8x8xbf16>, vector<8x8xbf16>, vector<8x8xf32> -> vector<8x8xf32>
    %63 = tpu.reciprocal %61 {approx = true} : vector<8x1xf32> -> vector<8x1xf32>
    %64 = vector.broadcast %63 : vector<8x1xf32> to vector<8x8xf32>
    %65 = arith.mulf %62, %64 : vector<8x8xf32>
    %66 = vector.extract_strided_slice %4 {offsets = [0, 24], sizes = [8, 8], strides = [1, 1]} : vector<8x96xbf16> to vector<8x8xbf16>
    %67 = vector.extract_strided_slice %6 {offsets = [0, 56], sizes = [8, 8], strides = [1, 1]} : vector<8x96xbf16> to vector<8x8xbf16>
    %68 = vector.extract_strided_slice %6 {offsets = [0, 88], sizes = [8, 8], strides = [1, 1]} : vector<8x96xbf16> to vector<8x8xbf16>
    %cst_18 = arith.constant dense<0.000000e+00> : vector<8x8xf32>
    %69 = tpu.matmul %66, %67, %cst_18 {dimension_numbers = #tpu.dot_dimension_numbers<[1], [1], [0], [0], [0, 0, 1, 0], [], []>} : vector<8x8xbf16>, vector<8x8xbf16>, vector<8x8xf32> -> vector<8x8xf32>
    %70 = vector.broadcast %8 : vector<1x8xf32> to vector<8x8xf32>
    %71 = arith.addf %69, %70 : vector<8x8xf32>
    %cst_19 = arith.constant dense<0xFF800000> : vector<8xf32>
    %72 = vector.multi_reduction <maximumf>, %71, %cst_19 [1] : vector<8x8xf32> to vector<8xf32>
    %73 = vector.shape_cast %72 : vector<8xf32> to vector<8x1xf32>
    %74 = vector.broadcast %73 : vector<8x1xf32> to vector<8x8xf32>
    %75 = arith.subf %71, %74 : vector<8x8xf32>
    %76 = arith.truncf %75 : vector<8x8xf32> to vector<8x8xbf16>
    %77 = math.exp %76 : vector<8x8xbf16>
    %78 = arith.extf %77 : vector<8x8xbf16> to vector<8x8xf32>
    %cst_20 = arith.constant dense<0.000000e+00> : vector<8xf32>
    %79 = vector.multi_reduction <add>, %78, %cst_20 [1] : vector<8x8xf32> to vector<8xf32>
    %80 = vector.shape_cast %79 : vector<8xf32> to vector<8x1xf32>
    %cst_21 = arith.constant dense<0.000000e+00> : vector<8x8xf32>
    %81 = tpu.matmul %77, %68, %cst_21 {dimension_numbers = #tpu.dot_dimension_numbers<[1], [0], [0], [1], [0, 0, 1, 1], [], []>} : vector<8x8xbf16>, vector<8x8xbf16>, vector<8x8xf32> -> vector<8x8xf32>
    %82 = tpu.reciprocal %80 {approx = true} : vector<8x1xf32> -> vector<8x1xf32>
    %83 = vector.broadcast %82 : vector<8x1xf32> to vector<8x8xf32>
    %84 = arith.mulf %81, %83 : vector<8x8xf32>
    %85 = tpu.concatenate %27, %46, %65, %84 in 1 : vector<8x8xf32>, vector<8x8xf32>, vector<8x8xf32>, vector<8x8xf32> -> vector<8x32xf32>
    %86 = arith.truncf %85 : vector<8x32xf32> to vector<8x32xbf16>
    %c0_22 = arith.constant 0 : index
    %c0_23 = arith.constant 0 : index
    %c0_24 = arith.constant 0 : index
    %87 = vector.load %arg4[%c0_22, %c0_23, %c0_24] : memref<1x8x32xbf16, #tpu.memory_space<vmem>>, vector<1x8x32xbf16>
    %88 = vector.shape_cast %87 : vector<1x8x32xbf16> to vector<8x32xbf16>
    %89 = vector.shape_cast %86 : vector<8x32xbf16> to vector<1x8x32xbf16>
    tpu.vector_store %arg4[%c0_22, %c0_23, %c0_24], %89 {strides = array<i32>} : memref<1x8x32xbf16, #tpu.memory_space<vmem>>, vector<1x8x32xbf16>,
    return
  }
  func.func @transform_0(%arg0: i32, %arg1: i32) -> (i32, i32, i32) {
    %c0_i32 = arith.constant 0 : i32
    %c0_i32_0 = arith.constant 0 : i32
    %c0_i32_1 = arith.constant 0 : i32
    return %arg0, %c0_i32, %c0_i32_0 : i32, i32, i32
  }
  func.func @transform_1(%arg0: i32, %arg1: i32) -> (i32, i32, i32) {
    %c0_i32 = arith.constant 0 : i32
    %c0_i32_0 = arith.constant 0 : i32
    %c0_i32_1 = arith.constant 0 : i32
    return %arg0, %c0_i32, %c0_i32_0 : i32, i32, i32
  }
  func.func @transform_2(%arg0: i32, %arg1: i32) -> (i32, i32, i32) {
    %c0_i32 = arith.constant 0 : i32
    %c0_i32_0 = arith.constant 0 : i32
    return %arg0, %arg1, %c0_i32 : i32, i32, i32
  }
}

module attributes {stable_mosaic.version = 11 : i64} {
  func.func @_matmul_bias_kernel(%arg0: i32, %arg1: i32, %arg2: memref<16x32xbf16, #tpu.memory_space<vmem>>, %arg3: memref<32x64xbf16, #tpu.memory_space<vmem>>, %arg4: memref<1x64xf32, #tpu.memory_space<vmem>>, %arg5: memref<16x64xbf16, #tpu.memory_space<vmem>>) attributes {dimension_semantics = [#tpu.dimension_semantics<parallel>, #tpu.dimension_semantics<parallel>], iteration_bounds = array<i64: 1, 1>, scalar_prefetch = 0 : i64, scratch_operands = 0 : i64, tpu.core_type = #tpu.core_type<tc>, window_params = [{transform_indices = @transform_0, window_bounds = array<i64: 16, 32>}, {transform_indices = @transform_1, window_bounds = array<i64: 32, 64>}, {transform_indices = @transform_2, window_bounds = array<i64: 1, 64>}, {transform_indices = @transform_3, window_bounds = array<i64: 16, 64>}]} {
    %c0 = arith.constant 0 : index
    %c0_0 = arith.constant 0 : index
    %0 = vector.load %arg2[%c0, %c0_0] : memref<16x32xbf16, #tpu.memory_space<vmem>>, vector<16x32xbf16>
    %c0_1 = arith.constant 0 : index
    %c0_2 = arith.constant 0 : index
    %1 = vector.load %arg3[%c0_1, %c0_2] : memref<32x64xbf16, #tpu.memory_space<vmem>>, vector<32x64xbf16>
    %cst = arith.constant dense<0.000000e+00> : vector<16x64xf32>
    %2 = tpu.matmul %0, %1, %cst {dimension_numbers = #tpu.dot_dimension_numbers<[1], [0], [0], [1], [0, 0, 1, 1], [], []>} : vector<16x32xbf16>, vector<32x64xbf16>, vector<16x64xf32> -> vector<16x64xf32>
    %c0_3 = arith.constant 0 : index
    %c0_4 = arith.constant 0 : index
    %3 = vector.load %arg4[%c0_3, %c0_4] : memref<1x64xf32, #tpu.memory_space<vmem>>, vector<1x64xf32>
    %4 = vector.broadcast %3 : vector<1x64xf32> to vector<16x64xf32>
    %5 = arith.addf %2, %4 : vector<16x64xf32>
    %6 = arith.mulf %5, %5 : vector<16x64xf32>
    %7 = arith.mulf %5, %6 : vector<16x64xf32>
    %cst_5 = arith.constant 4.471500e-02 : f32
    %8 = vector.broadcast %cst_5 : f32 to vector<16x64xf32>
    %9 = arith.mulf %8, %7 : vector<16x64xf32>
    %10 = arith.addf %5, %9 : vector<16x64xf32>
    %cst_6 = arith.constant 0.797884583 : f32
    %11 = vector.broadcast %cst_6 : f32 to vector<16x64xf32>
    %12 = arith.mulf %11, %10 : vector<16x64xf32>
    %13 = math.tanh %12 : vector<16x64xf32>
    %cst_7 = arith.constant 1.000000e+00 : f32
    %14 = vector.broadcast %cst_7 : f32 to vector<16x64xf32>
    %15 = arith.addf %14, %13 : vector<16x64xf32>
    %cst_8 = arith.constant 5.000000e-01 : f32
    %16 = vector.broadcast %cst_8 : f32 to vector<16x64xf32>
    %17 = arith.mulf %16, %15 : vector<16x64xf32>
    %18 = arith.mulf %5, %17 : vector<16x64xf32>
    %19 = arith.truncf %18 : vector<16x64xf32> to vector<16x64xbf16>
    %c0_9 = arith.constant 0 : index
    %c0_10 = arith.constant 0 : index
    %20 = vector.load %arg5[%c0_9, %c0_10] : memref<16x64xbf16, #tpu.memory_space<vmem>>, vector<16x64xbf16>
    tpu.vector_store %arg5[%c0_9, %c0_10], %19 {strides = array<i32>} : memref<16x64xbf16, #tpu.memory_space<vmem>>, vector<16x64xbf16>,
    return
  }
  func.func @transform_0(%arg0: i32, %arg1: i32) -> (i32, i32) {
    %c0_i32 = arith.constant 0 : i32
    %c0_i32_0 = arith.constant 0 : i32
    return %arg0, %c0_i32 : i32, i32
  }
  func.func @transform_1(%arg0: i32, %arg1: i32) -> (i32, i32) {
    %c0_i32 = arith.constant 0 : i32
    %c0_i32_0 = arith.constant 0 : i32
    return %c0_i32, %arg1 : i32, i32
  }
  func.func @transform_2(%arg0: i32, %arg1: i32) -> (i32, i32) {
    %c0_i32 = arith.constant 0 : i32
    %c0_i32_0 = arith.constant 0 : i32
    return %c0_i32, %arg1 : i32, i32
  }
  func.func @transform_3(%arg0: i32, %arg1: i32) -> (i32, i32) {
    %c0_i32 = arith.constant 0 : i32
    return %arg0, %arg1 : i32, i32
  }
}

module attributes {stable_mosaic.version = 11 : i64} {
  func.func @_matmul_bias_add_ln_kernel(%arg0: i32, %arg1: memref<16x64xbf16, #tpu.memory_space<vmem>>, %arg2: memref<64x32xbf16, #tpu.memory_space<vmem>>, %arg3: memref<1x32xf32, #tpu.memory_space<vmem>>, %arg4: memref<16x32xbf16, #tpu.memory_space<vmem>>, %arg5: memref<1x32xf32, #tpu.memory_space<vmem>>, %arg6: memref<1x32xf32, #tpu.memory_space<vmem>>, %arg7: memref<16x32xbf16, #tpu.memory_space<vmem>>) attributes {dimension_semantics = [#tpu.dimension_semantics<parallel>], iteration_bounds = array<i64: 1>, scalar_prefetch = 0 : i64, scratch_operands = 0 : i64, tpu.core_type = #tpu.core_type<tc>, window_params = [{transform_indices = @transform_0, window_bounds = array<i64: 16, 64>}, {pipeline_mode = #tpu.pipeline_mode<synchronous>, transform_indices = @transform_1, window_bounds = array<i64: 64, 32>}, {pipeline_mode = #tpu.pipeline_mode<synchronous>, transform_indices = @transform_2, window_bounds = array<i64: 1, 32>}, {transform_indices = @transform_3, window_bounds = array<i64: 16, 32>}, {pipeline_mode = #tpu.pipeline_mode<synchronous>, transform_indices = @transform_4, window_bounds = array<i64: 1, 32>}, {pipeline_mode = #tpu.pipeline_mode<synchronous>, transform_indices = @transform_5, window_bounds = array<i64: 1, 32>}, {transform_indices = @transform_6, window_bounds = array<i64: 16, 32>}]} {
    %c0 = arith.constant 0 : index
    %c0_0 = arith.constant 0 : index
    %0 = vector.load %arg1[%c0, %c0_0] : memref<16x64xbf16, #tpu.memory_space<vmem>>, vector<16x64xbf16>
    %c0_1 = arith.constant 0 : index
    %c0_2 = arith.constant 0 : index
    %1 = vector.load %arg2[%c0_1, %c0_2] : memref<64x32xbf16, #tpu.memory_space<vmem>>, vector<64x32xbf16>
    %cst = arith.constant dense<0.000000e+00> : vector<16x32xf32>
    %2 = tpu.matmul %0, %1, %cst {dimension_numbers = #tpu.dot_dimension_numbers<[1], [0], [0], [1], [0, 0, 1, 1], [], []>} : vector<16x64xbf16>, vector<64x32xbf16>, vector<16x32xf32> -> vector<16x32xf32>
    %c0_3 = arith.constant 0 : index
    %c0_4 = arith.constant 0 : index
    %3 = vector.load %arg3[%c0_3, %c0_4] : memref<1x32xf32, #tpu.memory_space<vmem>>, vector<1x32xf32>
    %4 = vector.broadcast %3 : vector<1x32xf32> to vector<16x32xf32>
    %5 = arith.addf %2, %4 : vector<16x32xf32>
    %c0_5 = arith.constant 0 : index
    %c0_6 = arith.constant 0 : index
    %6 = vector.load %arg4[%c0_5, %c0_6] : memref<16x32xbf16, #tpu.memory_space<vmem>>, vector<16x32xbf16>
    %7 = arith.extf %6 : vector<16x32xbf16> to vector<16x32xf32>
    %8 = arith.addf %5, %7 : vector<16x32xf32>
    %cst_7 = arith.constant dense<0.000000e+00> : vector<16xf32>
    %9 = vector.multi_reduction <add>, %8, %cst_7 [1] : vector<16x32xf32> to vector<16xf32>
    %10 = vector.shape_cast %9 : vector<16xf32> to vector<16x1xf32>
    %cst_8 = arith.constant 3.200000e+01 : f32
    %11 = vector.broadcast %cst_8 : f32 to vector<16x1xf32>
    %12 = arith.divf %10, %11 : vector<16x1xf32>
    %13 = vector.broadcast %12 : vector<16x1xf32> to vector<16x32xf32>
    %14 = arith.subf %8, %13 : vector<16x32xf32>
    %15 = arith.mulf %14, %14 : vector<16x32xf32>
    %cst_9 = arith.constant dense<0.000000e+00> : vector<16xf32>
    %16 = vector.multi_reduction <add>, %15, %cst_9 [1] : vector<16x32xf32> to vector<16xf32>
    %17 = vector.shape_cast %16 : vector<16xf32> to vector<16x1xf32>
    %cst_10 = arith.constant 3.200000e+01 : f32
    %18 = vector.broadcast %cst_10 : f32 to vector<16x1xf32>
    %19 = arith.divf %17, %18 : vector<16x1xf32>
    %20 = vector.broadcast %12 : vector<16x1xf32> to vector<16x32xf32>
    %21 = arith.subf %8, %20 : vector<16x32xf32>
    %cst_11 = arith.constant 9.99999996E-13 : f32
    %22 = vector.broadcast %cst_11 : f32 to vector<16x1xf32>
    %23 = arith.addf %19, %22 : vector<16x1xf32>
    %24 = math.rsqrt %23 : vector<16x1xf32>
    %25 = vector.broadcast %24 : vector<16x1xf32> to vector<16x32xf32>
    %26 = arith.mulf %21, %25 : vector<16x32xf32>
    %c0_12 = arith.constant 0 : index
    %c0_13 = arith.constant 0 : index
    %27 = vector.load %arg5[%c0_12, %c0_13] : memref<1x32xf32, #tpu.memory_space<vmem>>, vector<1x32xf32>
    %28 = vector.broadcast %27 : vector<1x32xf32> to vector<16x32xf32>
    %29 = arith.mulf %26, %28 : vector<16x32xf32>
    %c0_14 = arith.constant 0 : index
    %c0_15 = arith.constant 0 : index
    %30 = vector.load %arg6[%c0_14, %c0_15] : memref<1x32xf32, #tpu.memory_space<vmem>>, vector<1x32xf32>
    %31 = vector.broadcast %30 : vector<1x32xf32> to vector<16x32xf32>
    %32 = arith.addf %29, %31 : vector<16x32xf32>
    %33 = arith.truncf %32 : vector<16x32xf32> to vector<16x32xbf16>
    %c0_16 = arith.constant 0 : index
    %c0_17 = arith.constant 0 : index
    %34 = vector.load %arg7[%c0_16, %c0_17] : memref<16x32xbf16, #tpu.memory_space<vmem>>, vector<16x32xbf16>
    tpu.vector_store %arg7[%c0_16, %c0_17], %33 {strides = array<i32>} : memref<16x32xbf16, #tpu.memory_space<vmem>>, vector<16x32xbf16>,
    return
  }
  func.func @transform_0(%arg0: i32) -> (i32, i32) {
    %c0_i32 = arith.constant 0 : i32
    %c0_i32_0 = arith.constant 0 : i32
    return %arg0, %c0_i32 : i32, i32
  }
  func.func @transform_1(%arg0: i32) -> (i32, i32) {
    %c0_i32 = arith.constant 0 : i32
    %c0_i32_0 = arith.constant 0 : i32
    %c0_i32_1 = arith.constant 0 : i32
    return %c0_i32, %c0_i32_0 : i32, i32
  }
  func.func @transform_2(%arg0: i32) -> (i32, i32) {
    %c0_i32 = arith.constant 0 : i32
    %c0_i32_0 = arith.constant 0 : i32
    %c0_i32_1 = arith.constant 0 : i32
    return %c0_i32, %c0_i32_0 : i32, i32
  }
  func.func @transform_3(%arg0: i32) -> (i32, i32) {
    %c0_i32 = arith.constant 0 : i32
    %c0_i32_0 = arith.constant 0 : i32
    return %arg0, %c0_i32 : i32, i32
  }
  func.func @transform_4(%arg0: i32) -> (i32, i32) {
    %c0_i32 = arith.constant 0 : i32
    %c0_i32_0 = arith.constant 0 : i32
    %c0_i32_1 = arith.constant 0 : i32
    return %c0_i32, %c0_i32_0 : i32, i32
  }
  func.func @transform_5(%arg0: i32) -> (i32, i32) {
    %c0_i32 = arith.constant 0 : i32
    %c0_i32_0 = arith.constant 0 : i32
    %c0_i32_1 = arith.constant 0 : i32
    return %c0_i32, %c0_i32_0 : i32, i32
  }
  func.func @transform_6(%arg0: i32) -> (i32, i32) {
    %c0_i32 = arith.constant 0 : i32
    %c0_i32_0 = arith.constant 0 : i32
    return %arg0, %c0_i32 : i32, i32
  }
}

</mosaic_0001>

<llo_original>
// kernel: bioclinicalbert_ft_forward.11
$region0: #{bioclinicalbert_ft_forward.11}
  #allocation0 [shape = 'u32[]', space=smem, size = 0x4, offset = 0x4, fixed_abs, tag = 'smem constant byte address 0x4 - core index']
  #allocation1 [shape = 'u32[144,128]{1,0:T(1,128)}', space=vmem, size = 0x12000, scoped, tag = 'internal scratch']
  %s0 = inlined_call_operand.vmem [shape: bf16[16,32], index: 0, kind: input, shape index: {}]
  %s1 = inlined_call_operand.vmem [shape: f32[1,32], index: 1, kind: input, shape index: {}]
  %s2 = inlined_call_operand.vmem [shape: f32[1,32], index: 2, kind: input, shape index: {}]
  %s3 = inlined_call_operand.vmem [shape: bf16[16,32], index: 3, kind: output, shape index: {}]
  %s4 = sld [smem:[#allocation0]]
  $region22: #{bioclinicalbert_ft_forward.11} parent=0
    _
  %s6 = ssub.s32 1, %s4
  %s7 = scalar_select 0, %s6, %s4
  // Predicated region
  $region2: #{bioclinicalbert_ft_forward.11} parent=0 // pred_check
    _
  $region3: #{bioclinicalbert_ft_forward.11} parent=0 // pred_check_branch
    %9 = sbr.rel (0) target = $region5
  $region4: #{bioclinicalbert_ft_forward.11} parent=0 // pred_region
    _
  $region5: #{bioclinicalbert_ft_forward.11} parent=0 // pred_fallthru
    _
  // Predicated region
  $region6: #{bioclinicalbert_ft_forward.11} parent=0 // pred_check
    _
  $region7: #{bioclinicalbert_ft_forward.11} parent=0 // pred_check_branch
    %11 = sbr.rel (0) target = $region9
  $region8: #{bioclinicalbert_ft_forward.11} parent=0 // pred_region
    _
  $region9: #{bioclinicalbert_ft_forward.11} parent=0 // pred_fallthru
    _
  // Predicated region
  $region10: #{bioclinicalbert_ft_forward.11} parent=0 // pred_check
    _
  $region11: #{bioclinicalbert_ft_forward.11} parent=0 // pred_check_branch
    %13 = sbr.rel (0) target = $region13
  $region12: #{bioclinicalbert_ft_forward.11} parent=0 // pred_region
    _
  $region13: #{bioclinicalbert_ft_forward.11} parent=0 // pred_fallthru
    _
  %v14 = vld [vmem:[%s0] sm:$0xf]
  %v15 = vld [vmem:[%s0 + $0x4] sm:$0xf]
  %v16 = vunpack.c.l.bf16 %v14
  %v17 = vunpack.c.l.bf16 %v15
  %vm18 = vcmask 261120
  %v19 = vsel %vm18, %v16, 0.0
  %20 = vadd.xlane.f32.xlu0 %v19
  %v21 = vpop.xlane.xlu0 %20
  %v22 = vsel %vm18, %v17, 0.0
  %23 = vadd.xlane.f32.xlu0 %v22
  %v24 = vpop.xlane.xlu0 %23
  %v25 = vrcp.pop 32.0
  %v26 = vmul.f32 %v21, %v25
  %v27 = vmul.f32 %v24, %v25
  %v28 = vsub.f32 %v16, %v26
  %v29 = vsub.f32 %v17, %v27
  %v30 = vmul.f32 %v28, %v28
  %v31 = vmul.f32 %v29, %v29
  %v32 = vsel %vm18, %v30, 0.0
  %33 = vadd.xlane.f32.xlu0 %v32
  %v34 = vpop.xlane.xlu0 %33
  %v35 = vsel %vm18, %v31, 0.0
  %36 = vadd.xlane.f32.xlu0 %v35
  %v37 = vpop.xlane.xlu0 %36
  %v38 = vmul.f32 %v34, %v25
  %v39 = vmul.f32 %v37, %v25
  %v40 = vadd.f32 %v38, 1e-12
  %v41 = vadd.f32 %v39, 1e-12
  %v42 = vrsqrt.pop %v40
  %v43 = vrsqrt.pop %v41
  %v44 = vmul.f32 %v28, %v42
  %v45 = vmul.f32 %v29, %v43
  %v46 = vld [vmem:[%s1] sm:$0x1]
  %v48 = vlaneseq
  %v49 = vshrl.u32 %v48, 7
  %v50 = vsub.s32 0, %v49
  %v51 = vrot.slane %v46, %v50
  %v53 = vmul.f32 %v44, %v51
  %v54 = vmul.f32 %v45, %v51
  %v55 = vld [vmem:[%s2] sm:$0x1]
  %v57 = vlaneseq
  %v58 = vshrl.u32 %v57, 7
  %v59 = vsub.s32 0, %v58
  %v60 = vrot.slane %v55, %v59
  %v62 = vadd.f32 %v53, %v60
  %v63 = vadd.f32 %v54, %v60
  %v64 = vpack.c.bf16 %v63, %v62
  %v66 = vunpack.c.l.b16 %v64
  %v67 = vunpack.c.h.b16 %v64
  %v68 = vpack.c.b16 %v66, %v66
  %v69 = vpack.c.b16 %v67, %v67
  %vm72 = vcmask 257024
  %73 = vst.msk [vmem:[%s3] sm:$0xf] %vm72, %v68
  %74 = vst.msk [vmem:[%s3 + $0x4] sm:$0xf] %vm72, %v69
  // Predicated region
  $region14: #{bioclinicalbert_ft_forward.11} parent=0 // pred_check
    _
  $region15: #{bioclinicalbert_ft_forward.11} parent=0 // pred_check_branch
    %76 = sbr.rel (0) target = $region17
  $region16: #{bioclinicalbert_ft_forward.11} parent=0 // pred_region
    _
  $region17: #{bioclinicalbert_ft_forward.11} parent=0 // pred_fallthru
    _
  // Predicated region
  $region18: #{bioclinicalbert_ft_forward.11} parent=0 // pred_check
    _
  $region19: #{bioclinicalbert_ft_forward.11} parent=0 // pred_check_branch
    %78 = sbr.rel (0) target = $region21
  $region20: #{bioclinicalbert_ft_forward.11} parent=0 // pred_region
    _
  $region21: #{bioclinicalbert_ft_forward.11} parent=0 // pred_fallthru
    _

// kernel: bioclinicalbert_ft_forward.14
$region0: #{bioclinicalbert_ft_forward.14}
  #allocation0 [shape = 'u32[]', space=smem, size = 0x4, offset = 0x4, fixed_abs, tag = 'smem constant byte address 0x4 - core index']
  #allocation1 [shape = 'u32[144,128]{1,0:T(1,128)}', space=vmem, size = 0x12000, scoped, tag = 'internal scratch']
  %s0 = inlined_call_operand.vmem [shape: bf16[16,32], index: 0, kind: input, shape index: {}]
  %s1 = inlined_call_operand.vmem [shape: bf16[32,32], index: 1, kind: input, shape index: {}]
  %s2 = inlined_call_operand.vmem [shape: f32[1,32], index: 2, kind: input, shape index: {}]
  %s3 = inlined_call_operand.vmem [shape: bf16[16,32], index: 3, kind: input, shape index: {}]
  %s4 = inlined_call_operand.vmem [shape: f32[1,32], index: 4, kind: input, shape index: {}]
  %s5 = inlined_call_operand.vmem [shape: f32[1,32], index: 5, kind: input, shape index: {}]
  %s6 = inlined_call_operand.vmem [shape: bf16[16,32], index: 6, kind: output, shape index: {}]
  %s7 = sld [smem:[#allocation0]]
  $region34: #{bioclinicalbert_ft_forward.14} parent=0
    _
  %s9 = ssub.s32 1, %s7
  %s10 = scalar_select 0, %s9, %s7
  // Predicated region
  $region2: #{bioclinicalbert_ft_forward.14} parent=0 // pred_check
    _
  $region3: #{bioclinicalbert_ft_forward.14} parent=0 // pred_check_branch
    %12 = sbr.rel (0) target = $region5
  $region4: #{bioclinicalbert_ft_forward.14} parent=0 // pred_region
    _
  $region5: #{bioclinicalbert_ft_forward.14} parent=0 // pred_fallthru
    _
  // Predicated region
  $region6: #{bioclinicalbert_ft_forward.14} parent=0 // pred_check
    _
  $region7: #{bioclinicalbert_ft_forward.14} parent=0 // pred_check_branch
    %14 = sbr.rel (0) target = $region9
  $region8: #{bioclinicalbert_ft_forward.14} parent=0 // pred_region
    _
  $region9: #{bioclinicalbert_ft_forward.14} parent=0 // pred_fallthru
    _
  // Predicated region
  $region10: #{bioclinicalbert_ft_forward.14} parent=0 // pred_check
    _
  $region11: #{bioclinicalbert_ft_forward.14} parent=0 // pred_check_branch
    %16 = sbr.rel (0) target = $region13
  $region12: #{bioclinicalbert_ft_forward.14} parent=0 // pred_region
    _
  $region13: #{bioclinicalbert_ft_forward.14} parent=0 // pred_fallthru
    _
  // Predicated region
  $region14: #{bioclinicalbert_ft_forward.14} parent=0 // pred_check
    _
  $region15: #{bioclinicalbert_ft_forward.14} parent=0 // pred_check_branch
    %18 = sbr.rel (0) target = $region17
  $region16: #{bioclinicalbert_ft_forward.14} parent=0 // pred_region
    _
  $region17: #{bioclinicalbert_ft_forward.14} parent=0 // pred_fallthru
    _
  // Predicated region
  $region18: #{bioclinicalbert_ft_forward.14} parent=0 // pred_check
    _
  $region19: #{bioclinicalbert_ft_forward.14} parent=0 // pred_check_branch
    %20 = sbr.rel (0) target = $region21
  $region20: #{bioclinicalbert_ft_forward.14} parent=0 // pred_region
    _
  $region21: #{bioclinicalbert_ft_forward.14} parent=0 // pred_fallthru
    _
  // Predicated region
  $region22: #{bioclinicalbert_ft_forward.14} parent=0 // pred_check
    _
  $region23: #{bioclinicalbert_ft_forward.14} parent=0 // pred_check_branch
    %22 = sbr.rel (0) target = $region25
  $region24: #{bioclinicalbert_ft_forward.14} parent=0 // pred_region
    _
  $region25: #{bioclinicalbert_ft_forward.14} parent=0 // pred_fallthru
    _
  %v24 = vld [vmem:[%s0] sm:$0xf]
  %v25 = vld [vmem:[%s0 + $0x4] sm:$0xf]
  %v26 = vld [vmem:[%s1] sm:$0xf]
  %v27 = vld [vmem:[%s1 + $0x4] sm:$0xf]
  %v28 = vld [vmem:[%s1 + $0x8] sm:$0xf]
  %v29 = vld [vmem:[%s1 + $0xc] sm:$0xf]
  %v30 = vld [vmem:[%s2] sm:$0x1]
  %v32 = vlaneseq
  %v33 = vshrl.u32 %v32, 7
  %v34 = vsub.s32 0, %v33
  %v35 = vrot.slane %v30, %v34
  %v39 = vunpack.c.l.b16 %v24
  %v40 = vunpack.c.l.b16 %v25
  %v41 = vpack.c.b16 %v40, %v39
  %v46 = vunpack.c.l.b16 %v26
  %v47 = vunpack.c.l.b16 %v27
  %v48 = vunpack.c.l.b16 %v28
  %v49 = vunpack.c.l.b16 %v29
  %v50 = vpack.c.b16 %v47, %v46
  %v51 = vpack.c.b16 %v49, %v48
  %vm54 = vcmask 261120
  %v56 = vsel %vm54, %v41, 0
  %58 = vmatprep.subr.bf16.mxu0 0
  %59 = vmatpush1.bf16.msra.mxu0 %v50
  %60 = vmatprep.subr.bf16.mxu0 0
  %61 = vmatpush1.bf16.msra.mxu0 %v51
  %62 = vmatprep.subr.bf16.mxu0 0
  %63 = vmatpush1.bf16.msra.mxu0 0
  %64 = vmatprep.subr.bf16.mxu0 0
  %65 = vmatpush1.bf16.msra.mxu0 0
  %66 = vmatprep.subr.bf16.mxu0 0
  %67 = vmatpush1.bf16.msra.mxu0 0
  %68 = vmatprep.subr.bf16.mxu0 0
  %69 = vmatpush1.bf16.msra.mxu0 0
  %70 = vmatprep.subr.bf16.mxu0 0
  %71 = vmatpush1.bf16.msra.mxu0 0
  %72 = vmatprep.subr.bf16.mxu0 0
  %73 = vmatpush1.bf16.msra.mxu0 0
  %74 = vmatprep.subr.bf16.mxu0 0
  %75 = vmatpush1.bf16.msra.mxu0 0
  %76 = vmatprep.subr.bf16.mxu0 0
  %77 = vmatpush1.bf16.msra.mxu0 0
  %78 = vmatprep.subr.bf16.mxu0 0
  %79 = vmatpush1.bf16.msra.mxu0 0
  %80 = vmatprep.subr.bf16.mxu0 0
  %81 = vmatpush1.bf16.msra.mxu0 0
  %82 = vmatprep.subr.bf16.mxu0 0
  %83 = vmatpush1.bf16.msra.mxu0 0
  %84 = vmatprep.subr.bf16.mxu0 0
  %85 = vmatpush1.bf16.msra.mxu0 0
  %86 = vmatprep.subr.bf16.mxu0 0
  %87 = vmatpush1.bf16.msra.mxu0 0
  %88 = vmatprep.subr.bf16.mxu0 0
  %89 = vmatpush1.bf16.msra.mxu0 0
  %90 = vmatprep.mubr.bf16.mxu0 0
  %91 = vmatmul.mubr.bf16.gmra.mrb[0].mxu0 %v56
  %v92 = vpop.f32.mrb[0].mxu0
  %v93 = vadd.f32 %v35, %v92
  %v94 = vpop.f32.mrb[0].mxu0
  %v95 = vpop.f32.mrb[0].mxu0
  %v96 = vadd.f32 %v35, %v95
  %v97 = vpop.f32.mrb[0].mxu0
  %98 = vdwg.mxu0
  %v99 = vld [vmem:[%s3] sm:$0xf]
  %v100 = vld [vmem:[%s3 + $0x4] sm:$0xf]
  %v101 = vunpack.c.l.bf16 %v99
  %v102 = vunpack.c.l.bf16 %v100
  %v103 = vadd.f32 %v93, %v101
  %v104 = vadd.f32 %v96, %v102
  %v105 = vsel %vm54, %v103, 0.0
  %106 = vadd.xlane.f32.xlu0 %v105
  %v107 = vpop.xlane.xlu0 %106
  %v108 = vsel %vm54, %v104, 0.0
  %109 = vadd.xlane.f32.xlu0 %v108
  %v110 = vpop.xlane.xlu0 %109
  %v111 = vrcp.pop 32.0
  %v112 = vmul.f32 %v107, %v111
  %v113 = vmul.f32 %v110, %v111
  %v114 = vsub.f32 %v103, %v112
  %v115 = vsub.f32 %v104, %v113
  %v116 = vmul.f32 %v114, %v114
  %v117 = vmul.f32 %v115, %v115
  %v118 = vsel %vm54, %v116, 0.0
  %119 = vadd.xlane.f32.xlu0 %v118
  %v120 = vpop.xlane.xlu0 %119
  %v121 = vsel %vm54, %v117, 0.0
  %122 = vadd.xlane.f32.xlu0 %v121
  %v123 = vpop.xlane.xlu0 %122
  %v124 = vmul.f32 %v120, %v111
  %v125 = vmul.f32 %v123, %v111
  %v126 = vadd.f32 %v124, 1e-12
  %v127 = vadd.f32 %v125, 1e-12
  %v128 = vrsqrt.pop %v126
  %v129 = vrsqrt.pop %v127
  %v130 = vmul.f32 %v114, %v128
  %v131 = vmul.f32 %v115, %v129
  %v132 = vld [vmem:[%s4] sm:$0x1]
  %v134 = vlaneseq
  %v135 = vshrl.u32 %v134, 7
  %v136 = vsub.s32 0, %v135
  %v137 = vrot.slane %v132, %v136
  %v139 = vmul.f32 %v130, %v137
  %v140 = vmul.f32 %v131, %v137
  %v141 = vld [vmem:[%s5] sm:$0x1]
  %v143 = vlaneseq
  %v144 = vshrl.u32 %v143, 7
  %v145 = vsub.s32 0, %v144
  %v146 = vrot.slane %v141, %v145
  %v148 = vadd.f32 %v139, %v146
  %v149 = vadd.f32 %v140, %v146
  %v150 = vpack.c.bf16 %v149, %v148
  %v152 = vunpack.c.l.b16 %v150
  %v153 = vunpack.c.h.b16 %v150
  %v154 = vpack.c.b16 %v152, %v152
  %v155 = vpack.c.b16 %v153, %v153
  %vm158 = vcmask 257024
  %159 = vst.msk [vmem:[%s6] sm:$0xf] %vm158, %v154
  %160 = vst.msk [vmem:[%s6 + $0x4] sm:$0xf] %vm158, %v155
  // Predicated region
  $region26: #{bioclinicalbert_ft_forward.14} parent=0 // pred_check
    _
  $region27: #{bioclinicalbert_ft_forward.14} parent=0 // pred_check_branch
    %162 = sbr.rel (0) target = $region29
  $region28: #{bioclinicalbert_ft_forward.14} parent=0 // pred_region
    _
  $region29: #{bioclinicalbert_ft_forward.14} parent=0 // pred_fallthru
    _
  // Predicated region
  $region30: #{bioclinicalbert_ft_forward.14} parent=0 // pred_check
    _
  $region31: #{bioclinicalbert_ft_forward.14} parent=0 // pred_check_branch
    %164 = sbr.rel (0) target = $region33
  $region32: #{bioclinicalbert_ft_forward.14} parent=0 // pred_region
    _
  $region33: #{bioclinicalbert_ft_forward.14} parent=0 // pred_fallthru
    _

// kernel: bioclinicalbert_ft_forward.12
$region0: #{bioclinicalbert_ft_forward.12}
  #allocation0 [shape = 'u32[]', space=smem, size = 0x4, offset = 0x4, fixed_abs, tag = 'smem constant byte address 0x4 - core index']
  #allocation1 [shape = 'u32[144,128]{1,0:T(1,128)}', space=vmem, size = 0x12000, scoped, tag = 'internal scratch']
  %s0 = inlined_call_operand.vmem [shape: bf16[16,32], index: 0, kind: input, shape index: {}]
  %s1 = inlined_call_operand.vmem [shape: bf16[32,96], index: 1, kind: input, shape index: {}]
  %s2 = inlined_call_operand.vmem [shape: f32[1,96], index: 2, kind: input, shape index: {}]
  %s3 = inlined_call_operand.vmem [shape: bf16[16,96], index: 3, kind: output, shape index: {}]
  %s4 = sld [smem:[#allocation0]]
  $region22: #{bioclinicalbert_ft_forward.12} parent=0
    _
  %s6 = ssub.s32 1, %s4
  %s7 = scalar_select 0, %s6, %s4
  // Predicated region
  $region2: #{bioclinicalbert_ft_forward.12} parent=0 // pred_check
    _
  $region3: #{bioclinicalbert_ft_forward.12} parent=0 // pred_check_branch
    %9 = sbr.rel (0) target = $region5
  $region4: #{bioclinicalbert_ft_forward.12} parent=0 // pred_region
    _
  $region5: #{bioclinicalbert_ft_forward.12} parent=0 // pred_fallthru
    _
  // Predicated region
  $region6: #{bioclinicalbert_ft_forward.12} parent=0 // pred_check
    _
  $region7: #{bioclinicalbert_ft_forward.12} parent=0 // pred_check_branch
    %11 = sbr.rel (0) target = $region9
  $region8: #{bioclinicalbert_ft_forward.12} parent=0 // pred_region
    _
  $region9: #{bioclinicalbert_ft_forward.12} parent=0 // pred_fallthru
    _
  // Predicated region
  $region10: #{bioclinicalbert_ft_forward.12} parent=0 // pred_check
    _
  $region11: #{bioclinicalbert_ft_forward.12} parent=0 // pred_check_branch
    %13 = sbr.rel (0) target = $region13
  $region12: #{bioclinicalbert_ft_forward.12} parent=0 // pred_region
    _
  $region13: #{bioclinicalbert_ft_forward.12} parent=0 // pred_fallthru
    _
  %v15 = vld [vmem:[%s0] sm:$0xf]
  %v16 = vld [vmem:[%s0 + $0x4] sm:$0xf]
  %v17 = vld [vmem:[%s1] sm:$0xf]
  %v18 = vld [vmem:[%s1 + $0x4] sm:$0xf]
  %v19 = vld [vmem:[%s1 + $0x8] sm:$0xf]
  %v20 = vld [vmem:[%s1 + $0xc] sm:$0xf]
  %v21 = vld [vmem:[%s2] sm:$0x1]
  %v23 = vlaneseq
  %v24 = vshrl.u32 %v23, 7
  %v25 = vsub.s32 0, %v24
  %v26 = vrot.slane %v21, %v25
  %v30 = vunpack.c.l.b16 %v15
  %v31 = vunpack.c.l.b16 %v16
  %v32 = vpack.c.b16 %v31, %v30
  %v37 = vunpack.c.l.b16 %v17
  %v38 = vunpack.c.l.b16 %v18
  %v39 = vunpack.c.l.b16 %v19
  %v40 = vunpack.c.l.b16 %v20
  %v41 = vpack.c.b16 %v38, %v37
  %v42 = vpack.c.b16 %v40, %v39
  %vm45 = vcmask 261120
  %v47 = vsel %vm45, %v32, 0
  %49 = vmatprep.subr.bf16.mxu0 0
  %50 = vmatpush1.bf16.msra.mxu0 %v41
  %51 = vmatprep.subr.bf16.mxu0 0
  %52 = vmatpush1.bf16.msra.mxu0 %v42
  %53 = vmatprep.subr.bf16.mxu0 0
  %54 = vmatpush1.bf16.msra.mxu0 0
  %55 = vmatprep.subr.bf16.mxu0 0
  %56 = vmatpush1.bf16.msra.mxu0 0
  %57 = vmatprep.subr.bf16.mxu0 0
  %58 = vmatpush1.bf16.msra.mxu0 0
  %59 = vmatprep.subr.bf16.mxu0 0
  %60 = vmatpush1.bf16.msra.mxu0 0
  %61 = vmatprep.subr.bf16.mxu0 0
  %62 = vmatpush1.bf16.msra.mxu0 0
  %63 = vmatprep.subr.bf16.mxu0 0
  %64 = vmatpush1.bf16.msra.mxu0 0
  %65 = vmatprep.subr.bf16.mxu0 0
  %66 = vmatpush1.bf16.msra.mxu0 0
  %67 = vmatprep.subr.bf16.mxu0 0
  %68 = vmatpush1.bf16.msra.mxu0 0
  %69 = vmatprep.subr.bf16.mxu0 0
  %70 = vmatpush1.bf16.msra.mxu0 0
  %71 = vmatprep.subr.bf16.mxu0 0
  %72 = vmatpush1.bf16.msra.mxu0 0
  %73 = vmatprep.subr.bf16.mxu0 0
  %74 = vmatpush1.bf16.msra.mxu0 0
  %75 = vmatprep.subr.bf16.mxu0 0
  %76 = vmatpush1.bf16.msra.mxu0 0
  %77 = vmatprep.subr.bf16.mxu0 0
  %78 = vmatpush1.bf16.msra.mxu0 0
  %79 = vmatprep.subr.bf16.mxu0 0
  %80 = vmatpush1.bf16.msra.mxu0 0
  %81 = vmatprep.mubr.bf16.mxu0 0
  %82 = vmatmul.mubr.bf16.gmra.mrb[0].mxu0 %v47
  %v83 = vpop.f32.mrb[0].mxu0
  %v84 = vadd.f32 %v26, %v83
  %v85 = vpop.f32.mrb[0].mxu0
  %v86 = vpop.f32.mrb[0].mxu0
  %v87 = vadd.f32 %v26, %v86
  %v88 = vpop.f32.mrb[0].mxu0
  %89 = vdwg.mxu0
  %v90 = vpack.c.bf16 %v87, %v84
  %v92 = vunpack.c.l.b16 %v90
  %v93 = vunpack.c.h.b16 %v90
  %v94 = vpack.c.b16 %v92, %v92
  %v95 = vpack.c.b16 %v93, %v93
  %vm98 = vcmask 781312
  %99 = vst.msk [vmem:[%s3] sm:$0xf] %vm98, %v94
  %100 = vst.msk [vmem:[%s3 + $0x4] sm:$0xf] %vm98, %v95
  // Predicated region
  $region14: #{bioclinicalbert_ft_forward.12} parent=0 // pred_check
    _
  $region15: #{bioclinicalbert_ft_forward.12} parent=0 // pred_check_branch
    %102 = sbr.rel (0) target = $region17
  $region16: #{bioclinicalbert_ft_forward.12} parent=0 // pred_region
    _
  $region17: #{bioclinicalbert_ft_forward.12} parent=0 // pred_fallthru
    _
  // Predicated region
  $region18: #{bioclinicalbert_ft_forward.12} parent=0 // pred_check
    _
  $region19: #{bioclinicalbert_ft_forward.12} parent=0 // pred_check_branch
    %104 = sbr.rel (0) target = $region21
  $region20: #{bioclinicalbert_ft_forward.12} parent=0 // pred_region
    _
  $region21: #{bioclinicalbert_ft_forward.12} parent=0 // pred_fallthru
    _

// kernel: bioclinicalbert_ft_forward.13
$region0: #{bioclinicalbert_ft_forward.13}
  #allocation0 [shape = 'u32[]', space=smem, size = 0x4, offset = 0x4, fixed_abs, tag = 'smem constant byte address 0x4 - core index']
  #allocation1 [shape = 'u32[144,128]{1,0:T(1,128)}', space=vmem, size = 0x12000, scoped, tag = 'internal scratch']
  %s0 = inlined_call_operand.vmem [shape: bf16[2,8,96], index: 0, kind: input, shape index: {}]
  %s1 = inlined_call_operand.vmem [shape: f32[2,1,8], index: 1, kind: input, shape index: {}]
  %s2 = inlined_call_operand.vmem [shape: bf16[2,8,32], index: 2, kind: output, shape index: {}]
  %s3 = sld [smem:[#allocation0]]
  $region41: #{bioclinicalbert_ft_forward.13} parent=0
    _
  %s5 = ssub.s32 1, %s3
  %s6 = scalar_select 0, %s5, %s3
  loop: start=0, step=1, limit=4
  $region2: #{bioclinicalbert_ft_forward.13} parent=0 // loop_pre_header
    _
  $region3: #{bioclinicalbert_ft_forward.13} parent=0 // loop_header
    %s8 = sphi 0, %s12
    %p9 = scmp.ge.s32.totalorder %s8, 4
    %s15 = sphi 0, %s27
    %s16 = sphi 0, %s23
    %s17 = sphi 0, %s15
    %s18 = sphi 0, %s16
    %s19 = sphi 0, %s17
    %s20 = sphi 0, %s18
    %s30 = sphi 0, %s32
    %s33 = sphi 0, %s30
    %s34 = sphi 0, %s33
    %s50 = sphi 0, %s34
    %s56 = sphi 0, %s58
    %s59 = sphi 0, %s56
    %s60 = sphi 0, %s59
    %s76 = sphi 0, %s60
    %s84 = sphi 0, %s86
    %s87 = sphi 0, %s84
    %s88 = sphi 0, %s87
    %s104 = sphi 0, %s88
  $region4: #{bioclinicalbert_ft_forward.13} parent=0 // loop_header_branch
    %11 = sbr.rel (%p9) target = $region8
  $region5: #{bioclinicalbert_ft_forward.13} parent=0 // loop_body
    %s13 = ssub.s32 %s8, 1
    %s14 = ssub.s32 %s8, 2
    %s21 = sadd.s32 1, %s16
    %p22 = scmp.ge.s32.totalorder %s21, 1
    %s23 = scalar_select %p22, 0, %s21
    %s24 = sadd.s32 1, %s15
    %s25 = scalar_select %p22, %s24, %s15
    %p26 = scmp.ge.s32.totalorder %s25, 2
    %s27 = scalar_select %p26, 0, %s25
    %s28 = ssub.s32 %s15, %s27
    %p29 = scmp.eq.s32.totalorder %s28, 0
    %s31 = sadd.s32 %s30, 1
    %s32 = scalar_select %p29, %s30, %s31
    %p35 = pneg %p29
    %p36 = scmp.eq.s32.totalorder %s8, 1
    %p37 = por %p35, %p36
    %p38 = scmp.ne.s32.totalorder %s30, %s33
    %p39 = scmp.eq.s32.totalorder %s8, 0
    %p40 = por %p38, %p39
    %p41 = scmp.ne.s32.totalorder %s30, %s33
    %p42 = scmp.eq.s32.totalorder %s13, 1
    %p43 = por %p41, %p42
    %p44 = scmp.ne.s32.totalorder %s33, %s34
    %p45 = scmp.eq.s32.totalorder %s13, 0
    %p46 = por %p44, %p45
    %p47 = scmp.ne.s32.totalorder %s33, %s34
    %p48 = scmp.eq.s32.totalorder %s14, 1
    %p49 = por %p47, %p48
    %p51 = scmp.ne.s32.totalorder %s34, %s50
    %p52 = scmp.eq.s32.totalorder %s14, 0
    %p53 = por %p51, %p52
    %s54 = ssub.s32 %s15, %s27
    %p55 = scmp.eq.s32.totalorder %s54, 0
    %s57 = sadd.s32 %s56, 1
    %s58 = scalar_select %p55, %s56, %s57
    %p61 = pneg %p55
    %p62 = scmp.eq.s32.totalorder %s8, 1
    %p63 = por %p61, %p62
    %p64 = scmp.ne.s32.totalorder %s56, %s59
    %p65 = scmp.eq.s32.totalorder %s8, 0
    %p66 = por %p64, %p65
    %p67 = scmp.ne.s32.totalorder %s56, %s59
    %p68 = scmp.eq.s32.totalorder %s13, 1
    %p69 = por %p67, %p68
    %p70 = scmp.ne.s32.totalorder %s59, %s60
    %p71 = scmp.eq.s32.totalorder %s13, 0
    %p72 = por %p70, %p71
    %p73 = scmp.ne.s32.totalorder %s59, %s60
    %p74 = scmp.eq.s32.totalorder %s14, 1
    %p75 = por %p73, %p74
    %p77 = scmp.ne.s32.totalorder %s60, %s76
    %p78 = scmp.eq.s32.totalorder %s14, 0
    %p79 = por %p77, %p78
    %s80 = ssub.s32 %s15, %s27
    %s81 = ssub.s32 %s16, %s23
    %s82 = sor.u32 %s80, %s81
    %p83 = scmp.eq.s32.totalorder %s82, 0
    %s85 = sadd.s32 %s84, 1
    %s86 = scalar_select %p83, %s84, %s85
    %p89 = pneg %p83
    %p90 = scmp.eq.s32.totalorder %s8, 1
    %p91 = por %p89, %p90
    %p92 = scmp.ne.s32.totalorder %s84, %s87
    %p93 = scmp.eq.s32.totalorder %s8, 0
    %p94 = por %p92, %p93
    %p95 = scmp.ne.s32.totalorder %s84, %s87
    %p96 = scmp.eq.s32.totalorder %s13, 1
    %p97 = por %p95, %p96
    %p98 = scmp.ne.s32.totalorder %s87, %s88
    %p99 = scmp.eq.s32.totalorder %s13, 0
    %p100 = por %p98, %p99
    %p101 = scmp.ne.s32.totalorder %s87, %s88
    %p102 = scmp.eq.s32.totalorder %s14, 1
    %p103 = por %p101, %p102
    %p105 = scmp.ne.s32.totalorder %s88, %s104
    %p106 = scmp.eq.s32.totalorder %s14, 0
    %p107 = por %p105, %p106
    %p108 = scmp.le.s32.totalorder 1, %s8
    %p109 = scmp.lt.s32.totalorder %s8, 3
    %p110 = pnand %p108, %p109
    %p111 = pneg %p110
    // Predicated region
    $region9: #{bioclinicalbert_ft_forward.13} parent=5 // pred_check
      _
    $region10: #{bioclinicalbert_ft_forward.13} parent=5 // pred_check_branch
      %113 = sbr.rel (%p110) target = $region12
    $region11: #{bioclinicalbert_ft_forward.13} parent=5 // pred_region
      %s114 = ssub.s32 %s8, 1
    $region12: #{bioclinicalbert_ft_forward.13} parent=5 // pred_fallthru
      _
    %p115 = scmp.lt.s32.totalorder %s8, 2
    // Predicated region
    $region13: #{bioclinicalbert_ft_forward.13} parent=5 // pred_check
      %p116 = pneg %p115
    $region14: #{bioclinicalbert_ft_forward.13} parent=5 // pred_check_branch
      %118 = sbr.rel (%p116) target = $region16
    $region15: #{bioclinicalbert_ft_forward.13} parent=5 // pred_region
      // Predicated region
      $region17: #{bioclinicalbert_ft_forward.13} parent=15 // pred_check
        %p119 = pneg %p40
      $region18: #{bioclinicalbert_ft_forward.13} parent=15 // pred_check_branch
        %121 = sbr.rel (%p119) target = $region20
      $region19: #{bioclinicalbert_ft_forward.13} parent=15 // pred_region
        %p122 = scmp.lt.s32.totalorder %s15, 1
        %s123 = scalar_select %p122, %s15, 1
        %s124 = smul.addr %s123, 4
        %s125 = scalar_lea.vmem %s0, %s124
      $region20: #{bioclinicalbert_ft_forward.13} parent=15 // pred_fallthru
        _
      // Predicated region
      $region21: #{bioclinicalbert_ft_forward.13} parent=15 // pred_check
        %p126 = pneg %p66
      $region22: #{bioclinicalbert_ft_forward.13} parent=15 // pred_check_branch
        %128 = sbr.rel (%p126) target = $region24
      $region23: #{bioclinicalbert_ft_forward.13} parent=15 // pred_region
        %p129 = scmp.lt.s32.totalorder %s15, 1
        %s130 = scalar_select %p129, %s15, 1
        %s131 = scalar_lea.vmem %s1, %s130
      $region24: #{bioclinicalbert_ft_forward.13} parent=15 // pred_fallthru
        _
    $region16: #{bioclinicalbert_ft_forward.13} parent=5 // pred_fallthru
      _
    %p132 = scmp.le.s32.totalorder 1, %s8
    %p133 = scmp.lt.s32.totalorder %s8, 3
    %p134 = pnand %p132, %p133
    %p135 = pneg %p134
    // Predicated region
    $region25: #{bioclinicalbert_ft_forward.13} parent=5 // pred_check
      _
    $region26: #{bioclinicalbert_ft_forward.13} parent=5 // pred_check_branch
      %137 = sbr.rel (%p134) target = $region28
    $region27: #{bioclinicalbert_ft_forward.13} parent=5 // pred_region
      %s138 = ssub.s32 %s8, 1
      %p139 = scmp.lt.s32.totalorder %s17, 1
      %s140 = scalar_select %p139, %s17, 1
      %s141 = smul.addr %s140, 4
      %s142 = scalar_lea.vmem %s0, %s141
      %p143 = pneg %p46
      %p144 = pneg %p43
      %p145 = scmp.lt.s32.totalorder %s17, 1
      %s146 = scalar_select %p145, %s17, 1
      %s147 = scalar_lea.vmem %s1, %s146
      %p148 = pneg %p72
      %p149 = pneg %p69
      %p150 = pneg %p100
      %p151 = pneg %p97
      %p152 = scmp.lt.s32.totalorder %s17, 1
      %s153 = scalar_select %p152, %s17, 1
      %p154 = scmp.lt.s32.totalorder %s18, 0
      %s155 = scalar_select %p154, %s18, 0
      %s156 = sadd.s32 %s155, %s153
      %s157 = smul.addr %s156, 4
      %s158 = scalar_lea.vmem %s2, %s157
      %p159 = scmp.lt.s32.totalorder %s17, 1
      %s160 = scalar_select %p159, %s17, 1
      %s161 = smul.addr %s160, 4
      %s162 = scalar_lea.vmem %s0, %s161
      %p163 = scmp.lt.s32.totalorder %s17, 1
      %s164 = scalar_select %p163, %s17, 1
      %s165 = scalar_lea.vmem %s1, %s164
      %p166 = scmp.lt.s32.totalorder %s17, 1
      %s167 = scalar_select %p166, %s17, 1
      %p168 = scmp.lt.s32.totalorder %s18, 0
      %s169 = scalar_select %p168, %s18, 0
      %s170 = sadd.s32 %s169, %s167
      %s171 = smul.addr %s170, 4
      %s172 = scalar_lea.vmem %s2, %s171
      %s174 = smul.u32 %s18, 8
      %s175 = sshra.s32 %s174, 3
      %s176 = sand.u32 %s174, 7
      %s177 = smul.addr %s175, 4
      %s178 = scalar_lea.vmem %s162, %s177
      %v179 = vld [vmem:[%s178] sm:$0xf]
      %v180 = vld [vmem:[%s162] sm:$0xf]
      %v181 = vld [vmem:[%s165] sm:$0x1]
      %v183 = vlaneseq
      %v184 = vshrl.u32 %v183, 7
      %v185 = vsub.s32 0, %v184
      %v186 = vrot.slane %v181, %v185
      %v189 = vunpack.c.l.b16 %v180
      %v190 = vpack.c.b16 %v189, %v189
      %191 = vrot.lane.b32.xlu0 %v190, 96
      %v192 = vpop.permute.xlu0 %191
      %vm193 = vcmask 64512
      %v195 = vsel %vm193, %v179, 0
      %v198 = vsel %vm193, %v192, 0
      %200 = vmatprep.subr.bf16.mxu0 0
      %201 = vmatpush1.bf16.xpose.msra.mxu0 %v198
      %202 = vmatprep.subr.bf16.mxu0 0
      %203 = vmatpush1.bf16.xpose.msra.mxu0 0
      %204 = vmatprep.subr.bf16.mxu0 0
      %205 = vmatpush1.bf16.xpose.msra.mxu0 0
      %206 = vmatprep.subr.bf16.mxu0 0
      %207 = vmatpush1.bf16.xpose.msra.mxu0 0
      %208 = vmatprep.subr.bf16.mxu0 0
      %209 = vmatpush1.bf16.xpose.msra.mxu0 0
      %210 = vmatprep.subr.bf16.mxu0 0
      %211 = vmatpush1.bf16.xpose.msra.mxu0 0
      %212 = vmatprep.subr.bf16.mxu0 0
      %213 = vmatpush1.bf16.xpose.msra.mxu0 0
      %214 = vmatprep.subr.bf16.mxu0 0
      %215 = vmatpush1.bf16.xpose.msra.mxu0 0
      %216 = vmatprep.subr.bf16.mxu0 0
      %217 = vmatpush1.bf16.xpose.msra.mxu0 0
      %218 = vmatprep.subr.bf16.mxu0 0
      %219 = vmatpush1.bf16.xpose.msra.mxu0 0
      %220 = vmatprep.subr.bf16.mxu0 0
      %221 = vmatpush1.bf16.xpose.msra.mxu0 0
      %222 = vmatprep.subr.bf16.mxu0 0
      %223 = vmatpush1.bf16.xpose.msra.mxu0 0
      %224 = vmatprep.subr.bf16.mxu0 0
      %225 = vmatpush1.bf16.xpose.msra.mxu0 0
      %226 = vmatprep.subr.bf16.mxu0 0
      %227 = vmatpush1.bf16.xpose.msra.mxu0 0
      %228 = vmatprep.subr.bf16.mxu0 0
      %229 = vmatpush1.bf16.xpose.msra.mxu0 0
      %230 = vmatprep.subr.bf16.mxu0 0
      %231 = vmatpush1.bf16.xpose.msra.mxu0 0
      %232 = vmatprep.mubr.bf16.mxu0 0
      %233 = vmatmul.mubr.bf16.gmra.mrb[0].mxu0 %v195
      %v234 = vpop.f32.mrb[0].mxu0
      %v235 = vadd.f32 %v186, %v234
      %v236 = vpop.f32.mrb[0].mxu0
      %v237 = vpop.f32.mrb[0].mxu0
      %v238 = vpop.f32.mrb[0].mxu0
      %239 = vdwg.mxu0
      %v240 = vsel %vm193, %v235, -inf
      %241 = vmax.xlane.f32.xlu0 %v240
      %v242 = vpop.xlane.xlu0 %241
      %v243 = vsub.f32 %v235, %v242
      %v244 = vpack.c.bf16 %v243, %v243
      %v246 = vmul.bf16 %v244, 1069105081
      %v247 = vpow.bf16.pop %v246
      %v248 = vunpack.c.l.bf16 %v247
      %v249 = vsel %vm193, %v248, 0.0
      %250 = vadd.xlane.f32.xlu0 %v249
      %v251 = vpop.xlane.xlu0 %250
      %252 = vrot.lane.b32.xlu0 %v190, 64
      %v253 = vpop.permute.xlu0 %252
      %v255 = vsel %vm193, %v247, 0
      %vm257 = vcmask 1043456
      %v259 = vsel %vm257, %v253, 0
      %261 = vmatprep.subr.bf16.mxu0 0
      %262 = vmatpush1.bf16.msra.mxu0 %v259
      %263 = vmatprep.subr.bf16.mxu0 0
      %264 = vmatpush1.bf16.msra.mxu0 0
      %265 = vmatprep.subr.bf16.mxu0 0
      %266 = vmatpush1.bf16.msra.mxu0 0
      %267 = vmatprep.subr.bf16.mxu0 0
      %268 = vmatpush1.bf16.msra.mxu0 0
      %269 = vmatprep.subr.bf16.mxu0 0
      %270 = vmatpush1.bf16.msra.mxu0 0
      %271 = vmatprep.subr.bf16.mxu0 0
      %272 = vmatpush1.bf16.msra.mxu0 0
      %273 = vmatprep.subr.bf16.mxu0 0
      %274 = vmatpush1.bf16.msra.mxu0 0
      %275 = vmatprep.subr.bf16.mxu0 0
      %276 = vmatpush1.bf16.msra.mxu0 0
      %277 = vmatprep.subr.bf16.mxu0 0
      %278 = vmatpush1.bf16.msra.mxu0 0
      %279 = vmatprep.subr.bf16.mxu0 0
      %280 = vmatpush1.bf16.msra.mxu0 0
      %281 = vmatprep.subr.bf16.mxu0 0
      %282 = vmatpush1.bf16.msra.mxu0 0
      %283 = vmatprep.subr.bf16.mxu0 0
      %284 = vmatpush1.bf16.msra.mxu0 0
      %285 = vmatprep.subr.bf16.mxu0 0
      %286 = vmatpush1.bf16.msra.mxu0 0
      %287 = vmatprep.subr.bf16.mxu0 0
      %288 = vmatpush1.bf16.msra.mxu0 0
      %289 = vmatprep.subr.bf16.mxu0 0
      %290 = vmatpush1.bf16.msra.mxu0 0
      %291 = vmatprep.subr.bf16.mxu0 0
      %292 = vmatpush1.bf16.msra.mxu0 0
      %293 = vmatprep.mubr.bf16.mxu0 0
      %294 = vmatmul.mubr.bf16.gmra.mrb[0].mxu0 %v255
      %v295 = vpop.f32.mrb[0].mxu0
      %v296 = vadd.f32 0.0, %v295
      %v297 = vpop.f32.mrb[0].mxu0
      %v298 = vpop.f32.mrb[0].mxu0
      %v299 = vpop.f32.mrb[0].mxu0
      %300 = vdwg.mxu0
      %v301 = vrcp.pop %v251
      %v302 = vmul.f32 %v296, %v301
      %v304 = vunpack.c.l.b16 %v179
      %v305 = vpack.c.b16 %v304, %v304
      %306 = vrot.lane.b32.xlu0 %v305, 120
      %v307 = vpop.permute.xlu0 %306
      %308 = vrot.lane.b32.xlu0 %v190, 88
      %v309 = vpop.permute.xlu0 %308
      %v311 = vsel %vm193, %v307, 0
      %v314 = vsel %vm193, %v309, 0
      %316 = vmatprep.subr.bf16.mxu0 0
      %317 = vmatpush1.bf16.xpose.msra.mxu0 %v314
      %318 = vmatprep.subr.bf16.mxu0 0
      %319 = vmatpush1.bf16.xpose.msra.mxu0 0
      %320 = vmatprep.subr.bf16.mxu0 0
      %321 = vmatpush1.bf16.xpose.msra.mxu0 0
      %322 = vmatprep.subr.bf16.mxu0 0
      %323 = vmatpush1.bf16.xpose.msra.mxu0 0
      %324 = vmatprep.subr.bf16.mxu0 0
      %325 = vmatpush1.bf16.xpose.msra.mxu0 0
      %326 = vmatprep.subr.bf16.mxu0 0
      %327 = vmatpush1.bf16.xpose.msra.mxu0 0
      %328 = vmatprep.subr.bf16.mxu0 0
      %329 = vmatpush1.bf16.xpose.msra.mxu0 0
      %330 = vmatprep.subr.bf16.mxu0 0
      %331 = vmatpush1.bf16.xpose.msra.mxu0 0
      %332 = vmatprep.subr.bf16.mxu0 0
      %333 = vmatpush1.bf16.xpose.msra.mxu0 0
      %334 = vmatprep.subr.bf16.mxu0 0
      %335 = vmatpush1.bf16.xpose.msra.mxu0 0
      %336 = vmatprep.subr.bf16.mxu0 0
      %337 = vmatpush1.bf16.xpose.msra.mxu0 0
      %338 = vmatprep.subr.bf16.mxu0 0
      %339 = vmatpush1.bf16.xpose.msra.mxu0 0
      %340 = vmatprep.subr.bf16.mxu0 0
      %341 = vmatpush1.bf16.xpose.msra.mxu0 0
      %342 = vmatprep.subr.bf16.mxu0 0
      %343 = vmatpush1.bf16.xpose.msra.mxu0 0
      %344 = vmatprep.subr.bf16.mxu0 0
      %345 = vmatpush1.bf16.xpose.msra.mxu0 0
      %346 = vmatprep.subr.bf16.mxu0 0
      %347 = vmatpush1.bf16.xpose.msra.mxu0 0
      %348 = vmatprep.mubr.bf16.mxu0 0
      %349 = vmatmul.mubr.bf16.gmra.mrb[0].mxu0 %v311
      %v350 = vpop.f32.mrb[0].mxu0
      %v351 = vadd.f32 %v186, %v350
      %v352 = vpop.f32.mrb[0].mxu0
      %v353 = vpop.f32.mrb[0].mxu0
      %v354 = vpop.f32.mrb[0].mxu0
      %355 = vdwg.mxu0
      %v356 = vsel %vm193, %v351, -inf
      %357 = vmax.xlane.f32.xlu0 %v356
      %v358 = vpop.xlane.xlu0 %357
      %v359 = vsub.f32 %v351, %v358
      %v360 = vpack.c.bf16 %v359, %v359
      %v362 = vmul.bf16 %v360, 1069105081
      %v363 = vpow.bf16.pop %v362
      %v364 = vunpack.c.l.bf16 %v363
      %v365 = vsel %vm193, %v364, 0.0
      %366 = vadd.xlane.f32.xlu0 %v365
      %v367 = vpop.xlane.xlu0 %366
      %368 = vrot.lane.b32.xlu0 %v190, 56
      %v369 = vpop.permute.xlu0 %368
      %v371 = vsel %vm193, %v363, 0
      %v374 = vsel %vm257, %v369, 0
      %376 = vmatprep.subr.bf16.mxu0 0
      %377 = vmatpush1.bf16.msra.mxu0 %v374
      %378 = vmatprep.subr.bf16.mxu0 0
      %379 = vmatpush1.bf16.msra.mxu0 0
      %380 = vmatprep.subr.bf16.mxu0 0
      %381 = vmatpush1.bf16.msra.mxu0 0
      %382 = vmatprep.subr.bf16.mxu0 0
      %383 = vmatpush1.bf16.msra.mxu0 0
      %384 = vmatprep.subr.bf16.mxu0 0
      %385 = vmatpush1.bf16.msra.mxu0 0
      %386 = vmatprep.subr.bf16.mxu0 0
      %387 = vmatpush1.bf16.msra.mxu0 0
      %388 = vmatprep.subr.bf16.mxu0 0
      %389 = vmatpush1.bf16.msra.mxu0 0
      %390 = vmatprep.subr.bf16.mxu0 0
      %391 = vmatpush1.bf16.msra.mxu0 0
      %392 = vmatprep.subr.bf16.mxu0 0
      %393 = vmatpush1.bf16.msra.mxu0 0
      %394 = vmatprep.subr.bf16.mxu0 0
      %395 = vmatpush1.bf16.msra.mxu0 0
      %396 = vmatprep.subr.bf16.mxu0 0
      %397 = vmatpush1.bf16.msra.mxu0 0
      %398 = vmatprep.subr.bf16.mxu0 0
      %399 = vmatpush1.bf16.msra.mxu0 0
      %400 = vmatprep.subr.bf16.mxu0 0
      %401 = vmatpush1.bf16.msra.mxu0 0
      %402 = vmatprep.subr.bf16.mxu0 0
      %403 = vmatpush1.bf16.msra.mxu0 0
      %404 = vmatprep.subr.bf16.mxu0 0
      %405 = vmatpush1.bf16.msra.mxu0 0
      %406 = vmatprep.subr.bf16.mxu0 0
      %407 = vmatpush1.bf16.msra.mxu0 0
      %408 = vmatprep.mubr.bf16.mxu0 0
      %409 = vmatmul.mubr.bf16.gmra.mrb[0].mxu0 %v371
      %v410 = vpop.f32.mrb[0].mxu0
      %v411 = vadd.f32 0.0, %v410
      %v412 = vpop.f32.mrb[0].mxu0
      %v413 = vpop.f32.mrb[0].mxu0
      %v414 = vpop.f32.mrb[0].mxu0
      %415 = vdwg.mxu0
      %v416 = vrcp.pop %v367
      %v417 = vmul.f32 %v411, %v416
      %418 = vrot.lane.b32.xlu0 %v305, 112
      %v419 = vpop.permute.xlu0 %418
      %420 = vrot.lane.b32.xlu0 %v190, 80
      %v421 = vpop.permute.xlu0 %420
      %v423 = vsel %vm193, %v419, 0
      %v426 = vsel %vm193, %v421, 0
      %428 = vmatprep.subr.bf16.mxu0 0
      %429 = vmatpush1.bf16.xpose.msra.mxu0 %v426
      %430 = vmatprep.subr.bf16.mxu0 0
      %431 = vmatpush1.bf16.xpose.msra.mxu0 0
      %432 = vmatprep.subr.bf16.mxu0 0
      %433 = vmatpush1.bf16.xpose.msra.mxu0 0
      %434 = vmatprep.subr.bf16.mxu0 0
      %435 = vmatpush1.bf16.xpose.msra.mxu0 0
      %436 = vmatprep.subr.bf16.mxu0 0
      %437 = vmatpush1.bf16.xpose.msra.mxu0 0
      %438 = vmatprep.subr.bf16.mxu0 0
      %439 = vmatpush1.bf16.xpose.msra.mxu0 0
      %440 = vmatprep.subr.bf16.mxu0 0
      %441 = vmatpush1.bf16.xpose.msra.mxu0 0
      %442 = vmatprep.subr.bf16.mxu0 0
      %443 = vmatpush1.bf16.xpose.msra.mxu0 0
      %444 = vmatprep.subr.bf16.mxu0 0
      %445 = vmatpush1.bf16.xpose.msra.mxu0 0
      %446 = vmatprep.subr.bf16.mxu0 0
      %447 = vmatpush1.bf16.xpose.msra.mxu0 0
      %448 = vmatprep.subr.bf16.mxu0 0
      %449 = vmatpush1.bf16.xpose.msra.mxu0 0
      %450 = vmatprep.subr.bf16.mxu0 0
      %451 = vmatpush1.bf16.xpose.msra.mxu0 0
      %452 = vmatprep.subr.bf16.mxu0 0
      %453 = vmatpush1.bf16.xpose.msra.mxu0 0
      %454 = vmatprep.subr.bf16.mxu0 0
      %455 = vmatpush1.bf16.xpose.msra.mxu0 0
      %456 = vmatprep.subr.bf16.mxu0 0
      %457 = vmatpush1.bf16.xpose.msra.mxu0 0
      %458 = vmatprep.subr.bf16.mxu0 0
      %459 = vmatpush1.bf16.xpose.msra.mxu0 0
      %460 = vmatprep.mubr.bf16.mxu0 0
      %461 = vmatmul.mubr.bf16.gmra.mrb[0].mxu0 %v423
      %v462 = vpop.f32.mrb[0].mxu0
      %v463 = vadd.f32 %v186, %v462
      %v464 = vpop.f32.mrb[0].mxu0
      %v465 = vpop.f32.mrb[0].mxu0
      %v466 = vpop.f32.mrb[0].mxu0
      %467 = vdwg.mxu0
      %v468 = vsel %vm193, %v463, -inf
      %469 = vmax.xlane.f32.xlu0 %v468
      %v470 = vpop.xlane.xlu0 %469
      %v471 = vsub.f32 %v463, %v470
      %v472 = vpack.c.bf16 %v471, %v471
      %v474 = vmul.bf16 %v472, 1069105081
      %v475 = vpow.bf16.pop %v474
      %v476 = vunpack.c.l.bf16 %v475
      %v477 = vsel %vm193, %v476, 0.0
      %478 = vadd.xlane.f32.xlu0 %v477
      %v479 = vpop.xlane.xlu0 %478
      %480 = vrot.lane.b32.xlu0 %v190, 48
      %v481 = vpop.permute.xlu0 %480
      %v483 = vsel %vm193, %v475, 0
      %v486 = vsel %vm257, %v481, 0
      %488 = vmatprep.subr.bf16.mxu0 0
      %489 = vmatpush1.bf16.msra.mxu0 %v486
      %490 = vmatprep.subr.bf16.mxu0 0
      %491 = vmatpush1.bf16.msra.mxu0 0
      %492 = vmatprep.subr.bf16.mxu0 0
      %493 = vmatpush1.bf16.msra.mxu0 0
      %494 = vmatprep.subr.bf16.mxu0 0
      %495 = vmatpush1.bf16.msra.mxu0 0
      %496 = vmatprep.subr.bf16.mxu0 0
      %497 = vmatpush1.bf16.msra.mxu0 0
      %498 = vmatprep.subr.bf16.mxu0 0
      %499 = vmatpush1.bf16.msra.mxu0 0
      %500 = vmatprep.subr.bf16.mxu0 0
      %501 = vmatpush1.bf16.msra.mxu0 0
      %502 = vmatprep.subr.bf16.mxu0 0
      %503 = vmatpush1.bf16.msra.mxu0 0
      %504 = vmatprep.subr.bf16.mxu0 0
      %505 = vmatpush1.bf16.msra.mxu0 0
      %506 = vmatprep.subr.bf16.mxu0 0
      %507 = vmatpush1.bf16.msra.mxu0 0
      %508 = vmatprep.subr.bf16.mxu0 0
      %509 = vmatpush1.bf16.msra.mxu0 0
      %510 = vmatprep.subr.bf16.mxu0 0
      %511 = vmatpush1.bf16.msra.mxu0 0
      %512 = vmatprep.subr.bf16.mxu0 0
      %513 = vmatpush1.bf16.msra.mxu0 0
      %514 = vmatprep.subr.bf16.mxu0 0
      %515 = vmatpush1.bf16.msra.mxu0 0
      %516 = vmatprep.subr.bf16.mxu0 0
      %517 = vmatpush1.bf16.msra.mxu0 0
      %518 = vmatprep.subr.bf16.mxu0 0
      %519 = vmatpush1.bf16.msra.mxu0 0
      %520 = vmatprep.mubr.bf16.mxu0 0
      %521 = vmatmul.mubr.bf16.gmra.mrb[0].mxu0 %v483
      %v522 = vpop.f32.mrb[0].mxu0
      %v523 = vadd.f32 0.0, %v522
      %v524 = vpop.f32.mrb[0].mxu0
      %v525 = vpop.f32.mrb[0].mxu0
      %v526 = vpop.f32.mrb[0].mxu0
      %527 = vdwg.mxu0
      %v528 = vrcp.pop %v479
      %v529 = vmul.f32 %v523, %v528
      %530 = vrot.lane.b32.xlu0 %v305, 104
      %v531 = vpop.permute.xlu0 %530
      %532 = vrot.lane.b32.xlu0 %v190, 72
      %v533 = vpop.permute.xlu0 %532
      %v535 = vsel %vm193, %v531, 0
      %v538 = vsel %vm193, %v533, 0
      %540 = vmatprep.subr.bf16.mxu0 0
      %541 = vmatpush1.bf16.xpose.msra.mxu0 %v538
      %542 = vmatprep.subr.bf16.mxu0 0
      %543 = vmatpush1.bf16.xpose.msra.mxu0 0
      %544 = vmatprep.subr.bf16.mxu0 0
      %545 = vmatpush1.bf16.xpose.msra.mxu0 0
      %546 = vmatprep.subr.bf16.mxu0 0
      %547 = vmatpush1.bf16.xpose.msra.mxu0 0
      %548 = vmatprep.subr.bf16.mxu0 0
      %549 = vmatpush1.bf16.xpose.msra.mxu0 0
      %550 = vmatprep.subr.bf16.mxu0 0
      %551 = vmatpush1.bf16.xpose.msra.mxu0 0
      %552 = vmatprep.subr.bf16.mxu0 0
      %553 = vmatpush1.bf16.xpose.msra.mxu0 0
      %554 = vmatprep.subr.bf16.mxu0 0
      %555 = vmatpush1.bf16.xpose.msra.mxu0 0
      %556 = vmatprep.subr.bf16.mxu0 0
      %557 = vmatpush1.bf16.xpose.msra.mxu0 0
      %558 = vmatprep.subr.bf16.mxu0 0
      %559 = vmatpush1.bf16.xpose.msra.mxu0 0
      %560 = vmatprep.subr.bf16.mxu0 0
      %561 = vmatpush1.bf16.xpose.msra.mxu0 0
      %562 = vmatprep.subr.bf16.mxu0 0
      %563 = vmatpush1.bf16.xpose.msra.mxu0 0
      %564 = vmatprep.subr.bf16.mxu0 0
      %565 = vmatpush1.bf16.xpose.msra.mxu0 0
      %566 = vmatprep.subr.bf16.mxu0 0
      %567 = vmatpush1.bf16.xpose.msra.mxu0 0
      %568 = vmatprep.subr.bf16.mxu0 0
      %569 = vmatpush1.bf16.xpose.msra.mxu0 0
      %570 = vmatprep.subr.bf16.mxu0 0
      %571 = vmatpush1.bf16.xpose.msra.mxu0 0
      %572 = vmatprep.mubr.bf16.mxu0 0
      %573 = vmatmul.mubr.bf16.gmra.mrb[0].mxu0 %v535
      %v574 = vpop.f32.mrb[0].mxu0
      %v575 = vadd.f32 %v186, %v574
      %v576 = vpop.f32.mrb[0].mxu0
      %v577 = vpop.f32.mrb[0].mxu0
      %v578 = vpop.f32.mrb[0].mxu0
      %579 = vdwg.mxu0
      %v580 = vsel %vm193, %v575, -inf
      %581 = vmax.xlane.f32.xlu0 %v580
      %v582 = vpop.xlane.xlu0 %581
      %v583 = vsub.f32 %v575, %v582
      %v584 = vpack.c.bf16 %v583, %v583
      %v586 = vmul.bf16 %v584, 1069105081
      %v587 = vpow.bf16.pop %v586
      %v588 = vunpack.c.l.bf16 %v587
      %v589 = vsel %vm193, %v588, 0.0
      %590 = vadd.xlane.f32.xlu0 %v589
      %v591 = vpop.xlane.xlu0 %590
      %592 = vrot.lane.b32.xlu0 %v190, 40
      %v593 = vpop.permute.xlu0 %592
      %v595 = vsel %vm193, %v587, 0
      %v598 = vsel %vm257, %v593, 0
      %600 = vmatprep.subr.bf16.mxu0 0
      %601 = vmatpush1.bf16.msra.mxu0 %v598
      %602 = vmatprep.subr.bf16.mxu0 0
      %603 = vmatpush1.bf16.msra.mxu0 0
      %604 = vmatprep.subr.bf16.mxu0 0
      %605 = vmatpush1.bf16.msra.mxu0 0
      %606 = vmatprep.subr.bf16.mxu0 0
      %607 = vmatpush1.bf16.msra.mxu0 0
      %608 = vmatprep.subr.bf16.mxu0 0
      %609 = vmatpush1.bf16.msra.mxu0 0
      %610 = vmatprep.subr.bf16.mxu0 0
      %611 = vmatpush1.bf16.msra.mxu0 0
      %612 = vmatprep.subr.bf16.mxu0 0
      %613 = vmatpush1.bf16.msra.mxu0 0
      %614 = vmatprep.subr.bf16.mxu0 0
      %615 = vmatpush1.bf16.msra.mxu0 0
      %616 = vmatprep.subr.bf16.mxu0 0
      %617 = vmatpush1.bf16.msra.mxu0 0
      %618 = vmatprep.subr.bf16.mxu0 0
      %619 = vmatpush1.bf16.msra.mxu0 0
      %620 = vmatprep.subr.bf16.mxu0 0
      %621 = vmatpush1.bf16.msra.mxu0 0
      %622 = vmatprep.subr.bf16.mxu0 0
      %623 = vmatpush1.bf16.msra.mxu0 0
      %624 = vmatprep.subr.bf16.mxu0 0
      %625 = vmatpush1.bf16.msra.mxu0 0
      %626 = vmatprep.subr.bf16.mxu0 0
      %627 = vmatpush1.bf16.msra.mxu0 0
      %628 = vmatprep.subr.bf16.mxu0 0
      %629 = vmatpush1.bf16.msra.mxu0 0
      %630 = vmatprep.subr.bf16.mxu0 0
      %631 = vmatpush1.bf16.msra.mxu0 0
      %632 = vmatprep.mubr.bf16.mxu0 0
      %633 = vmatmul.mubr.bf16.gmra.mrb[0].mxu0 %v595
      %v634 = vpop.f32.mrb[0].mxu0
      %v635 = vadd.f32 0.0, %v634
      %v636 = vpop.f32.mrb[0].mxu0
      %v637 = vpop.f32.mrb[0].mxu0
      %v638 = vpop.f32.mrb[0].mxu0
      %639 = vdwg.mxu0
      %v640 = vrcp.pop %v591
      %v641 = vmul.f32 %v635, %v640
      %643 = vrot.lane.b32.xlu0 %v417, 8
      %v644 = vpop.permute.xlu0 %643
      %647 = vrot.lane.b32.xlu0 %v529, 16
      %v648 = vpop.permute.xlu0 %647
      %651 = vrot.lane.b32.xlu0 %v641, 24
      %v652 = vpop.permute.xlu0 %651
      %v654 = vsel %vm193, %v302, %v644
      %vm655 = vcmask 130048
      %v656 = vsel %vm655, %v654, %v648
      %vm657 = vcmask 195584
      %v658 = vsel %vm657, %v656, %v652
      %v659 = vpack.c.bf16 %v658, %v658
      %vm660 = vcmask 257024
      %661 = vst.msk [vmem:[%s172] sm:$0xf] %vm660, %v659
      %p662 = scmp.lt.s32.totalorder %s17, 1
      %s663 = scalar_select %p662, %s17, 1
      %p664 = scmp.lt.s32.totalorder %s18, 0
      %s665 = scalar_select %p664, %s18, 0
      %s666 = sadd.s32 %s665, %s663
      %s667 = smul.addr %s666, 4
      %s668 = scalar_lea.vmem %s2, %s667
      // Predicated region
      $region29: #{bioclinicalbert_ft_forward.13} parent=27 // pred_check
        %p669 = pneg %p97
      $region30: #{bioclinicalbert_ft_forward.13} parent=27 // pred_check_branch
        %671 = sbr.rel (%p669) target = $region32
      $region31: #{bioclinicalbert_ft_forward.13} parent=27 // pred_region
        _
      $region32: #{bioclinicalbert_ft_forward.13} parent=27 // pred_fallthru
        _
    $region28: #{bioclinicalbert_ft_forward.13} parent=5 // pred_fallthru
      _
    %p672 = scmp.le.s32.totalorder 2, %s8
    // Predicated region
    $region33: #{bioclinicalbert_ft_forward.13} parent=5 // pred_check
      %p673 = pneg %p672
    $region34: #{bioclinicalbert_ft_forward.13} parent=5 // pred_check_branch
      %675 = sbr.rel (%p673) target = $region36
    $region35: #{bioclinicalbert_ft_forward.13} parent=5 // pred_region
      %s676 = ssub.s32 %s8, 2
      // Predicated region
      $region37: #{bioclinicalbert_ft_forward.13} parent=35 // pred_check
        %p677 = pneg %p103
      $region38: #{bioclinicalbert_ft_forward.13} parent=35 // pred_check_branch
        %679 = sbr.rel (%p677) target = $region40
      $region39: #{bioclinicalbert_ft_forward.13} parent=35 // pred_region
        %p680 = scmp.lt.s32.totalorder %s19, 1
        %s681 = scalar_select %p680, %s19, 1
        %p682 = scmp.lt.s32.totalorder %s20, 0
        %s683 = scalar_select %p682, %s20, 0
        %s684 = sadd.s32 %s683, %s681
        %s685 = smul.addr %s684, 4
        %s686 = scalar_lea.vmem %s2, %s685
      $region40: #{bioclinicalbert_ft_forward.13} parent=35 // pred_fallthru
        _
    $region36: #{bioclinicalbert_ft_forward.13} parent=5 // pred_fallthru
      _
  $region6: #{bioclinicalbert_ft_forward.13} parent=0 // loop_footer
    %s12 = sadd.s32 1, %s8
  $region7: #{bioclinicalbert_ft_forward.13} parent=0 // loop_footer_branch
    %7 = sbr.rel target = $region3
  $region8: #{bioclinicalbert_ft_forward.13} parent=0 // loop_exit
    _

// kernel: bioclinicalbert_ft_forward.15
$region0: #{bioclinicalbert_ft_forward.15}
  #allocation0 [shape = 'u32[]', space=smem, size = 0x4, offset = 0x4, fixed_abs, tag = 'smem constant byte address 0x4 - core index']
  #allocation1 [shape = 'u32[144,128]{1,0:T(1,128)}', space=vmem, size = 0x12000, scoped, tag = 'internal scratch']
  %s0 = inlined_call_operand.vmem [shape: bf16[16,32], index: 0, kind: input, shape index: {}]
  %s1 = inlined_call_operand.vmem [shape: bf16[32,64], index: 1, kind: input, shape index: {}]
  %s2 = inlined_call_operand.vmem [shape: f32[1,64], index: 2, kind: input, shape index: {}]
  %s3 = inlined_call_operand.vmem [shape: bf16[16,64], index: 3, kind: output, shape index: {}]
  %s4 = sld [smem:[#allocation0]]
  $region22: #{bioclinicalbert_ft_forward.15} parent=0
    _
  %s6 = ssub.s32 1, %s4
  %s7 = scalar_select 0, %s6, %s4
  // Predicated region
  $region2: #{bioclinicalbert_ft_forward.15} parent=0 // pred_check
    _
  $region3: #{bioclinicalbert_ft_forward.15} parent=0 // pred_check_branch
    %9 = sbr.rel (0) target = $region5
  $region4: #{bioclinicalbert_ft_forward.15} parent=0 // pred_region
    _
  $region5: #{bioclinicalbert_ft_forward.15} parent=0 // pred_fallthru
    _
  // Predicated region
  $region6: #{bioclinicalbert_ft_forward.15} parent=0 // pred_check
    _
  $region7: #{bioclinicalbert_ft_forward.15} parent=0 // pred_check_branch
    %11 = sbr.rel (0) target = $region9
  $region8: #{bioclinicalbert_ft_forward.15} parent=0 // pred_region
    _
  $region9: #{bioclinicalbert_ft_forward.15} parent=0 // pred_fallthru
    _
  // Predicated region
  $region10: #{bioclinicalbert_ft_forward.15} parent=0 // pred_check
    _
  $region11: #{bioclinicalbert_ft_forward.15} parent=0 // pred_check_branch
    %13 = sbr.rel (0) target = $region13
  $region12: #{bioclinicalbert_ft_forward.15} parent=0 // pred_region
    _
  $region13: #{bioclinicalbert_ft_forward.15} parent=0 // pred_fallthru
    _
  %v15 = vld [vmem:[%s0] sm:$0xf]
  %v16 = vld [vmem:[%s0 + $0x4] sm:$0xf]
  %v17 = vld [vmem:[%s1] sm:$0xf]
  %v18 = vld [vmem:[%s1 + $0x4] sm:$0xf]
  %v19 = vld [vmem:[%s1 + $0x8] sm:$0xf]
  %v20 = vld [vmem:[%s1 + $0xc] sm:$0xf]
  %v21 = vld [vmem:[%s2] sm:$0x1]
  %v23 = vlaneseq
  %v24 = vshrl.u32 %v23, 7
  %v25 = vsub.s32 0, %v24
  %v26 = vrot.slane %v21, %v25
  %v30 = vunpack.c.l.b16 %v15
  %v31 = vunpack.c.l.b16 %v16
  %v32 = vpack.c.b16 %v31, %v30
  %v37 = vunpack.c.l.b16 %v17
  %v38 = vunpack.c.l.b16 %v18
  %v39 = vunpack.c.l.b16 %v19
  %v40 = vunpack.c.l.b16 %v20
  %v41 = vpack.c.b16 %v38, %v37
  %v42 = vpack.c.b16 %v40, %v39
  %vm45 = vcmask 261120
  %v47 = vsel %vm45, %v32, 0
  %49 = vmatprep.subr.bf16.mxu0 0
  %50 = vmatpush1.bf16.msra.mxu0 %v41
  %51 = vmatprep.subr.bf16.mxu0 0
  %52 = vmatpush1.bf16.msra.mxu0 %v42
  %53 = vmatprep.subr.bf16.mxu0 0
  %54 = vmatpush1.bf16.msra.mxu0 0
  %55 = vmatprep.subr.bf16.mxu0 0
  %56 = vmatpush1.bf16.msra.mxu0 0
  %57 = vmatprep.subr.bf16.mxu0 0
  %58 = vmatpush1.bf16.msra.mxu0 0
  %59 = vmatprep.subr.bf16.mxu0 0
  %60 = vmatpush1.bf16.msra.mxu0 0
  %61 = vmatprep.subr.bf16.mxu0 0
  %62 = vmatpush1.bf16.msra.mxu0 0
  %63 = vmatprep.subr.bf16.mxu0 0
  %64 = vmatpush1.bf16.msra.mxu0 0
  %65 = vmatprep.subr.bf16.mxu0 0
  %66 = vmatpush1.bf16.msra.mxu0 0
  %67 = vmatprep.subr.bf16.mxu0 0
  %68 = vmatpush1.bf16.msra.mxu0 0
  %69 = vmatprep.subr.bf16.mxu0 0
  %70 = vmatpush1.bf16.msra.mxu0 0
  %71 = vmatprep.subr.bf16.mxu0 0
  %72 = vmatpush1.bf16.msra.mxu0 0
  %73 = vmatprep.subr.bf16.mxu0 0
  %74 = vmatpush1.bf16.msra.mxu0 0
  %75 = vmatprep.subr.bf16.mxu0 0
  %76 = vmatpush1.bf16.msra.mxu0 0
  %77 = vmatprep.subr.bf16.mxu0 0
  %78 = vmatpush1.bf16.msra.mxu0 0
  %79 = vmatprep.subr.bf16.mxu0 0
  %80 = vmatpush1.bf16.msra.mxu0 0
  %81 = vmatprep.mubr.bf16.mxu0 0
  %82 = vmatmul.mubr.bf16.gmra.mrb[0].mxu0 %v47
  %v83 = vpop.f32.mrb[0].mxu0
  %v84 = vadd.f32 %v26, %v83
  %v85 = vpop.f32.mrb[0].mxu0
  %v86 = vpop.f32.mrb[0].mxu0
  %v87 = vadd.f32 %v26, %v86
  %v88 = vpop.f32.mrb[0].mxu0
  %89 = vdwg.mxu0
  %v90 = vmul.f32 %v84, %v84
  %v91 = vmul.f32 %v87, %v87
  %v92 = vmul.f32 %v84, %v90
  %v93 = vmul.f32 %v87, %v91
  %v94 = vmul.f32 %v92, 0.044715
  %v95 = vmul.f32 %v93, 0.044715
  %v96 = vadd.f32 %v84, %v94
  %v97 = vadd.f32 %v87, %v95
  %v98 = vmul.f32 %v96, 0.7978846
  %v99 = vmul.f32 %v97, 0.7978846
  %v100 = vtanh.pop %v98
  %v101 = vtanh.pop %v99
  %v102 = vadd.f32 %v100, 1.0
  %v103 = vadd.f32 %v101, 1.0
  %v104 = vmul.f32 %v102, 0.5
  %v105 = vmul.f32 %v103, 0.5
  %v106 = vmul.f32 %v84, %v104
  %v107 = vmul.f32 %v87, %v105
  %v108 = vpack.c.bf16 %v107, %v106
  %v110 = vunpack.c.l.b16 %v108
  %v111 = vunpack.c.h.b16 %v108
  %v112 = vpack.c.b16 %v110, %v110
  %v113 = vpack.c.b16 %v111, %v111
  %vm116 = vcmask 519168
  %117 = vst.msk [vmem:[%s3] sm:$0xf] %vm116, %v112
  %118 = vst.msk [vmem:[%s3 + $0x4] sm:$0xf] %vm116, %v113
  // Predicated region
  $region14: #{bioclinicalbert_ft_forward.15} parent=0 // pred_check
    _
  $region15: #{bioclinicalbert_ft_forward.15} parent=0 // pred_check_branch
    %120 = sbr.rel (0) target = $region17
  $region16: #{bioclinicalbert_ft_forward.15} parent=0 // pred_region
    _
  $region17: #{bioclinicalbert_ft_forward.15} parent=0 // pred_fallthru
    _
  // Predicated region
  $region18: #{bioclinicalbert_ft_forward.15} parent=0 // pred_check
    _
  $region19: #{bioclinicalbert_ft_forward.15} parent=0 // pred_check_branch
    %122 = sbr.rel (0) target = $region21
  $region20: #{bioclinicalbert_ft_forward.15} parent=0 // pred_region
    _
  $region21: #{bioclinicalbert_ft_forward.15} parent=0 // pred_fallthru
    _

// kernel: bioclinicalbert_ft_forward.16
$region0: #{bioclinicalbert_ft_forward.16}
  #allocation0 [shape = 'u32[]', space=smem, size = 0x4, offset = 0x4, fixed_abs, tag = 'smem constant byte address 0x4 - core index']
  #allocation1 [shape = 'u32[144,128]{1,0:T(1,128)}', space=vmem, size = 0x12000, scoped, tag = 'internal scratch']
  %s0 = inlined_call_operand.vmem [shape: bf16[16,64], index: 0, kind: input, shape index: {}]
  %s1 = inlined_call_operand.vmem [shape: bf16[64,32], index: 1, kind: input, shape index: {}]
  %s2 = inlined_call_operand.vmem [shape: f32[1,32], index: 2, kind: input, shape index: {}]
  %s3 = inlined_call_operand.vmem [shape: bf16[16,32], index: 3, kind: input, shape index: {}]
  %s4 = inlined_call_operand.vmem [shape: f32[1,32], index: 4, kind: input, shape index: {}]
  %s5 = inlined_call_operand.vmem [shape: f32[1,32], index: 5, kind: input, shape index: {}]
  %s6 = inlined_call_operand.vmem [shape: bf16[16,32], index: 6, kind: output, shape index: {}]
  %s7 = sld [smem:[#allocation0]]
  $region34: #{bioclinicalbert_ft_forward.16} parent=0
    _
  %s9 = ssub.s32 1, %s7
  %s10 = scalar_select 0, %s9, %s7
  // Predicated region
  $region2: #{bioclinicalbert_ft_forward.16} parent=0 // pred_check
    _
  $region3: #{bioclinicalbert_ft_forward.16} parent=0 // pred_check_branch
    %12 = sbr.rel (0) target = $region5
  $region4: #{bioclinicalbert_ft_forward.16} parent=0 // pred_region
    _
  $region5: #{bioclinicalbert_ft_forward.16} parent=0 // pred_fallthru
    _
  // Predicated region
  $region6: #{bioclinicalbert_ft_forward.16} parent=0 // pred_check
    _
  $region7: #{bioclinicalbert_ft_forward.16} parent=0 // pred_check_branch
    %14 = sbr.rel (0) target = $region9
  $region8: #{bioclinicalbert_ft_forward.16} parent=0 // pred_region
    _
  $region9: #{bioclinicalbert_ft_forward.16} parent=0 // pred_fallthru
    _
  // Predicated region
  $region10: #{bioclinicalbert_ft_forward.16} parent=0 // pred_check
    _
  $region11: #{bioclinicalbert_ft_forward.16} parent=0 // pred_check_branch
    %16 = sbr.rel (0) target = $region13
  $region12: #{bioclinicalbert_ft_forward.16} parent=0 // pred_region
    _
  $region13: #{bioclinicalbert_ft_forward.16} parent=0 // pred_fallthru
    _
  // Predicated region
  $region14: #{bioclinicalbert_ft_forward.16} parent=0 // pred_check
    _
  $region15: #{bioclinicalbert_ft_forward.16} parent=0 // pred_check_branch
    %18 = sbr.rel (0) target = $region17
  $region16: #{bioclinicalbert_ft_forward.16} parent=0 // pred_region
    _
  $region17: #{bioclinicalbert_ft_forward.16} parent=0 // pred_fallthru
    _
  // Predicated region
  $region18: #{bioclinicalbert_ft_forward.16} parent=0 // pred_check
    _
  $region19: #{bioclinicalbert_ft_forward.16} parent=0 // pred_check_branch
    %20 = sbr.rel (0) target = $region21
  $region20: #{bioclinicalbert_ft_forward.16} parent=0 // pred_region
    _
  $region21: #{bioclinicalbert_ft_forward.16} parent=0 // pred_fallthru
    _
  // Predicated region
  $region22: #{bioclinicalbert_ft_forward.16} parent=0 // pred_check
    _
  $region23: #{bioclinicalbert_ft_forward.16} parent=0 // pred_check_branch
    %22 = sbr.rel (0) target = $region25
  $region24: #{bioclinicalbert_ft_forward.16} parent=0 // pred_region
    _
  $region25: #{bioclinicalbert_ft_forward.16} parent=0 // pred_fallthru
    _
  %v24 = vld [vmem:[%s0] sm:$0xf]
  %v25 = vld [vmem:[%s0 + $0x4] sm:$0xf]
  %v26 = vld [vmem:[%s1] sm:$0xf]
  %v27 = vld [vmem:[%s1 + $0x4] sm:$0xf]
  %v28 = vld [vmem:[%s1 + $0x8] sm:$0xf]
  %v29 = vld [vmem:[%s1 + $0xc] sm:$0xf]
  %v30 = vld [vmem:[%s1 + $0x10] sm:$0xf]
  %v31 = vld [vmem:[%s1 + $0x14] sm:$0xf]
  %v32 = vld [vmem:[%s1 + $0x18] sm:$0xf]
  %v33 = vld [vmem:[%s1 + $0x1c] sm:$0xf]
  %v34 = vld [vmem:[%s2] sm:$0x1]
  %v36 = vlaneseq
  %v37 = vshrl.u32 %v36, 7
  %v38 = vsub.s32 0, %v37
  %v39 = vrot.slane %v34, %v38
  %v43 = vunpack.c.l.b16 %v24
  %v44 = vunpack.c.l.b16 %v25
  %v45 = vpack.c.b16 %v44, %v43
  %v54 = vunpack.c.l.b16 %v26
  %v55 = vunpack.c.l.b16 %v27
  %v56 = vunpack.c.l.b16 %v28
  %v57 = vunpack.c.l.b16 %v29
  %v58 = vunpack.c.l.b16 %v30
  %v59 = vunpack.c.l.b16 %v31
  %v60 = vunpack.c.l.b16 %v32
  %v61 = vunpack.c.l.b16 %v33
  %v62 = vpack.c.b16 %v55, %v54
  %v63 = vpack.c.b16 %v57, %v56
  %v64 = vpack.c.b16 %v59, %v58
  %v65 = vpack.c.b16 %v61, %v60
  %vm70 = vcmask 523264
  %v72 = vsel %vm70, %v45, 0
  %74 = vmatprep.subr.bf16.mxu0 0
  %75 = vmatpush1.bf16.msra.mxu0 %v62
  %76 = vmatprep.subr.bf16.mxu0 0
  %77 = vmatpush1.bf16.msra.mxu0 %v63
  %78 = vmatprep.subr.bf16.mxu0 0
  %79 = vmatpush1.bf16.msra.mxu0 %v64
  %80 = vmatprep.subr.bf16.mxu0 0
  %81 = vmatpush1.bf16.msra.mxu0 %v65
  %82 = vmatprep.subr.bf16.mxu0 0
  %83 = vmatpush1.bf16.msra.mxu0 0
  %84 = vmatprep.subr.bf16.mxu0 0
  %85 = vmatpush1.bf16.msra.mxu0 0
  %86 = vmatprep.subr.bf16.mxu0 0
  %87 = vmatpush1.bf16.msra.mxu0 0
  %88 = vmatprep.subr.bf16.mxu0 0
  %89 = vmatpush1.bf16.msra.mxu0 0
  %90 = vmatprep.subr.bf16.mxu0 0
  %91 = vmatpush1.bf16.msra.mxu0 0
  %92 = vmatprep.subr.bf16.mxu0 0
  %93 = vmatpush1.bf16.msra.mxu0 0
  %94 = vmatprep.subr.bf16.mxu0 0
  %95 = vmatpush1.bf16.msra.mxu0 0
  %96 = vmatprep.subr.bf16.mxu0 0
  %97 = vmatpush1.bf16.msra.mxu0 0
  %98 = vmatprep.subr.bf16.mxu0 0
  %99 = vmatpush1.bf16.msra.mxu0 0
  %100 = vmatprep.subr.bf16.mxu0 0
  %101 = vmatpush1.bf16.msra.mxu0 0
  %102 = vmatprep.subr.bf16.mxu0 0
  %103 = vmatpush1.bf16.msra.mxu0 0
  %104 = vmatprep.subr.bf16.mxu0 0
  %105 = vmatpush1.bf16.msra.mxu0 0
  %106 = vmatprep.mubr.bf16.mxu0 0
  %107 = vmatmul.mubr.bf16.gmra.mrb[0].mxu0 %v72
  %v108 = vpop.f32.mrb[0].mxu0
  %v109 = vadd.f32 %v39, %v108
  %v110 = vpop.f32.mrb[0].mxu0
  %v111 = vpop.f32.mrb[0].mxu0
  %v112 = vadd.f32 %v39, %v111
  %v113 = vpop.f32.mrb[0].mxu0
  %114 = vdwg.mxu0
  %v115 = vld [vmem:[%s3] sm:$0xf]
  %v116 = vld [vmem:[%s3 + $0x4] sm:$0xf]
  %v117 = vunpack.c.l.bf16 %v115
  %v118 = vunpack.c.l.bf16 %v116
  %v119 = vadd.f32 %v109, %v117
  %v120 = vadd.f32 %v112, %v118
  %vm121 = vcmask 261120
  %v122 = vsel %vm121, %v119, 0.0
  %123 = vadd.xlane.f32.xlu0 %v122
  %v124 = vpop.xlane.xlu0 %123
  %v125 = vsel %vm121, %v120, 0.0
  %126 = vadd.xlane.f32.xlu0 %v125
  %v127 = vpop.xlane.xlu0 %126
  %v128 = vrcp.pop 32.0
  %v129 = vmul.f32 %v124, %v128
  %v130 = vmul.f32 %v127, %v128
  %v131 = vsub.f32 %v119, %v129
  %v132 = vsub.f32 %v120, %v130
  %v133 = vmul.f32 %v131, %v131
  %v134 = vmul.f32 %v132, %v132
  %v135 = vsel %vm121, %v133, 0.0
  %136 = vadd.xlane.f32.xlu0 %v135
  %v137 = vpop.xlane.xlu0 %136
  %v138 = vsel %vm121, %v134, 0.0
  %139 = vadd.xlane.f32.xlu0 %v138
  %v140 = vpop.xlane.xlu0 %139
  %v141 = vmul.f32 %v137, %v128
  %v142 = vmul.f32 %v140, %v128
  %v143 = vadd.f32 %v141, 1e-12
  %v144 = vadd.f32 %v142, 1e-12
  %v145 = vrsqrt.pop %v143
  %v146 = vrsqrt.pop %v144
  %v147 = vmul.f32 %v131, %v145
  %v148 = vmul.f32 %v132, %v146
  %v149 = vld [vmem:[%s4] sm:$0x1]
  %v151 = vlaneseq
  %v152 = vshrl.u32 %v151, 7
  %v153 = vsub.s32 0, %v152
  %v154 = vrot.slane %v149, %v153
  %v156 = vmul.f32 %v147, %v154
  %v157 = vmul.f32 %v148, %v154
  %v158 = vld [vmem:[%s5] sm:$0x1]
  %v160 = vlaneseq
  %v161 = vshrl.u32 %v160, 7
  %v162 = vsub.s32 0, %v161
  %v163 = vrot.slane %v158, %v162
  %v165 = vadd.f32 %v156, %v163
  %v166 = vadd.f32 %v157, %v163
  %v167 = vpack.c.bf16 %v166, %v165
  %v169 = vunpack.c.l.b16 %v167
  %v170 = vunpack.c.h.b16 %v167
  %v171 = vpack.c.b16 %v169, %v169
  %v172 = vpack.c.b16 %v170, %v170
  %vm175 = vcmask 257024
  %176 = vst.msk [vmem:[%s6] sm:$0xf] %vm175, %v171
  %177 = vst.msk [vmem:[%s6 + $0x4] sm:$0xf] %vm175, %v172
  // Predicated region
  $region26: #{bioclinicalbert_ft_forward.16} parent=0 // pred_check
    _
  $region27: #{bioclinicalbert_ft_forward.16} parent=0 // pred_check_branch
    %179 = sbr.rel (0) target = $region29
  $region28: #{bioclinicalbert_ft_forward.16} parent=0 // pred_region
    _
  $region29: #{bioclinicalbert_ft_forward.16} parent=0 // pred_fallthru
    _
  // Predicated region
  $region30: #{bioclinicalbert_ft_forward.16} parent=0 // pred_check
    _
  $region31: #{bioclinicalbert_ft_forward.16} parent=0 // pred_check_branch
    %181 = sbr.rel (0) target = $region33
  $region32: #{bioclinicalbert_ft_forward.16} parent=0 // pred_region
    _
  $region33: #{bioclinicalbert_ft_forward.16} parent=0 // pred_fallthru
    _

</llo_original>
